<compile_context>
chip_gen: v7x
topology: tpu7x:2x2x1
jax: 0.10.0
libtpu: 0.0.40
codegen_flags: <defaults>
</compile_context>

<pallas_src>
import functools

import jax
import jax.numpy as jnp
from jax.experimental import pallas as pl
from jax.experimental.pallas import tpu as pltpu

SEQ_LEN = 10
D_MODEL = 256
IN_FEATURES = SEQ_LEN * D_MODEL      # 2560
OUT_FEATURES = 235
N_PAD = 256                          # lane-dense padded feature dim
B_ALIGN = 16                         # dense bf16 sublane packing
BN_EPS = 1e-5


def _protype_kernel(x_ref, w_ref, gamma_ref, beta_ref, o_ref, *, inv_b):
    # x_ref:     (S, B_pad, D)   f32 activations, native (S, B, D) layout
    # w_ref:     (S, D, N_PAD)   bf16 reordered/padded Linear weight
    # gamma_ref: (1, N_PAD)      f32 BN weight (pad = 1)
    # beta_ref:  (1, N_PAD)      f32 BN bias   (pad = 0)
    # o_ref:     (B_pad, N_PAD)  f32 output (padded)
    b_pad = x_ref.shape[1]

    # Fully-unrolled in-kernel S reduction (static trip count -> unrolled at
    # trace time): 10 small MXU matmuls accumulating into a live f32 value.
    y = jnp.zeros((b_pad, N_PAD), dtype=jnp.float32)
    for s in range(SEQ_LEN):
        y = y + jnp.dot(x_ref[s].astype(jnp.bfloat16), w_ref[s],
                        preferred_element_type=jnp.float32)

    # BatchNorm1d, training mode (biased variance over the REAL batch rows).
    # Padded batch rows of y are exact zeros, so sum / sum-of-squares over
    # all rows equal the sums over real rows; divide by the real B.
    s1 = jnp.sum(y, axis=0, keepdims=True)
    s2 = jnp.sum(y * y, axis=0, keepdims=True)
    mean = s1 * inv_b
    var = s2 * inv_b - mean * mean
    scale = gamma_ref[...] * jax.lax.rsqrt(var + BN_EPS)     # gamma folded in
    shift = beta_ref[...] - mean * scale
    o_ref[...] = (y * scale + shift).astype(o_ref.dtype)


def prepare_params(w, b, gamma, beta):
    """One-time (init) reorder / pad / cast of the module parameters.

    w:     (235, 2560) PyTorch Linear weight, flattened index k = d*SEQ_LEN + s
    b:     (235,)      Linear bias -- cancelled exactly by BN mean subtraction
    gamma: (235,)      BN weight
    beta:  (235,)      BN bias
    """
    del b  # mathematically a no-op under training-mode BatchNorm
    w_r = w.reshape(OUT_FEATURES, D_MODEL, SEQ_LEN)     # [n, d, s]
    w_r = jnp.transpose(w_r, (2, 1, 0))                 # [s, d, n]
    w_r = jnp.pad(w_r, ((0, 0), (0, 0), (0, N_PAD - OUT_FEATURES)))
    w_r = w_r.astype(jnp.bfloat16)                      # (10, 256, 256) bf16

    gamma_p = jnp.pad(gamma.astype(jnp.float32),
                      (0, N_PAD - OUT_FEATURES),
                      constant_values=1.0).reshape(1, N_PAD)
    beta_p = jnp.pad(beta.astype(jnp.float32),
                     (0, N_PAD - OUT_FEATURES)).reshape(1, N_PAD)
    return w_r, gamma_p, beta_p


def protype_forward(src, w_r, gamma_p, beta_p):
    """src: (S, B, D) float32 in its native layout (no per-call transpose).
    Returns (B, 235) float32 == BatchNorm1d(Linear(flatten(permute(src))))."""
    S, B, D = src.shape
    assert S == SEQ_LEN and D == D_MODEL

    b_pad = max(B_ALIGN, ((B + B_ALIGN - 1) // B_ALIGN) * B_ALIGN)
    if b_pad != B:
        src = jnp.pad(src, ((0, 0), (0, b_pad - B), (0, 0)))

    grid_spec = pltpu.PrefetchScalarGridSpec(
        num_scalar_prefetch=0,
        grid=(1,),                                   # single step: no per-step overhead
        in_specs=[
            pl.BlockSpec((SEQ_LEN, b_pad, D_MODEL), lambda i: (0, 0, 0)),
            pl.BlockSpec((SEQ_LEN, D_MODEL, N_PAD), lambda i: (0, 0, 0)),
            pl.BlockSpec((1, N_PAD), lambda i: (0, 0)),
            pl.BlockSpec((1, N_PAD), lambda i: (0, 0)),
        ],
        out_specs=pl.BlockSpec((b_pad, N_PAD), lambda i: (0, 0)),
    )

    kernel = functools.partial(_protype_kernel, inv_b=1.0 / float(B))

    out_padded = pl.pallas_call(
        kernel,
        out_shape=jax.ShapeDtypeStruct((b_pad, N_PAD), jnp.float32),
        grid_spec=grid_spec,
        compiler_params=pltpu.CompilerParams(
            dimension_semantics=("arbitrary",),
        ),
        cost_estimate=pl.CostEstimate(
            flops=2 * b_pad * IN_FEATURES * N_PAD,
            transcendentals=0,
            bytes_accessed=(SEQ_LEN * D_MODEL * N_PAD * 2    # bf16 weight
                            + b_pad * IN_FEATURES * 4        # f32 activations
                            + b_pad * N_PAD * 4              # f32 output
                            + 2 * N_PAD * 4),                # BN params
        ),
    )(src, w_r, gamma_p, beta_p)

    # TODO(synk): downstream consumers that tolerate the padded (b_pad, 256)
    # slab can skip this non-lane-dense slice copy entirely.
    return out_padded[:B, :OUT_FEATURES]


def _reference(src, w, b, gamma, beta):
    """Pure-JAX reference with the same bf16 matmul operands / f32 accum."""
    S, B, D = src.shape
    x2d = jnp.transpose(src, (1, 2, 0)).reshape(B, D * S)
    y = jnp.dot(x2d.astype(jnp.bfloat16), w.T.astype(jnp.bfloat16),
                preferred_element_type=jnp.float32) + b
    mean = jnp.mean(y, axis=0, keepdims=True)
    var = jnp.mean((y - mean) ** 2, axis=0, keepdims=True)
    return (y - mean) / jnp.sqrt(var + BN_EPS) * gamma + beta


if __name__ == "__main__":
    key = jax.random.PRNGKey(0)
    k_src, k_w, k_b, k_g, k_be = jax.random.split(key, 5)

    # seq=10 and dim=256 are fixed by the module (Linear expects 2560 inputs);
    # B=12 is ragged on purpose to exercise the batch-padding path.
    S, B, D = SEQ_LEN, 12, D_MODEL
    src = jax.random.normal(k_src, (S, B, D), dtype=jnp.float32)

    # Deterministic parameter init (shapes from nn.Linear / nn.BatchNorm1d).
    bound = 1.0 / (IN_FEATURES ** 0.5)
    w = jax.random.uniform(k_w, (OUT_FEATURES, IN_FEATURES),
                           minval=-bound, maxval=bound, dtype=jnp.float32)
    b = jax.random.uniform(k_b, (OUT_FEATURES,),
                           minval=-bound, maxval=bound, dtype=jnp.float32)
    gamma = 1.0 + 0.1 * jax.random.normal(k_g, (OUT_FEATURES,), dtype=jnp.float32)
    beta = 0.1 * jax.random.normal(k_be, (OUT_FEATURES,), dtype=jnp.float32)

    # One-time weight reorder / pad / bf16 cast (init cost, not per-call).
    w_r, gamma_p, beta_p = prepare_params(w, b, gamma, beta)

    out = jax.block_until_ready(protype_forward(src, w_r, gamma_p, beta_p))
    ref = jax.block_until_ready(_reference(src, w, b, gamma, beta))

    assert out.shape == (B, OUT_FEATURES)
    err = float(jnp.max(jnp.abs(out - ref)))
    assert err < 2e-3, f"mismatch vs JAX reference: {err}"

    print("KERNEL_OK")
</pallas_src>

<mosaic_0001>
module attributes {stable_mosaic.version = 11 : i64} {
  func.func @_protype_kernel(%arg0: i32, %arg1: memref<10x16x256xf32, #tpu.memory_space<vmem>>, %arg2: memref<10x256x256xbf16, #tpu.memory_space<vmem>>, %arg3: memref<1x256xf32, #tpu.memory_space<vmem>>, %arg4: memref<1x256xf32, #tpu.memory_space<vmem>>, %arg5: memref<16x256xf32, #tpu.memory_space<vmem>>) attributes {dimension_semantics = [#tpu.dimension_semantics<arbitrary>], iteration_bounds = array<i64: 1>, scalar_prefetch = 0 : i64, scratch_operands = 0 : i64, tpu.core_type = #tpu.core_type<tc>, window_params = [{pipeline_mode = #tpu.pipeline_mode<synchronous>, transform_indices = @transform_0, window_bounds = array<i64: 10, 16, 256>}, {pipeline_mode = #tpu.pipeline_mode<synchronous>, transform_indices = @transform_1, window_bounds = array<i64: 10, 256, 256>}, {pipeline_mode = #tpu.pipeline_mode<synchronous>, transform_indices = @transform_2, window_bounds = array<i64: 1, 256>}, {pipeline_mode = #tpu.pipeline_mode<synchronous>, transform_indices = @transform_3, window_bounds = array<i64: 1, 256>}, {pipeline_mode = #tpu.pipeline_mode<synchronous>, transform_indices = @transform_4, window_bounds = array<i64: 16, 256>}]} {
    %cst = arith.constant 0.000000e+00 : f32
    %0 = vector.broadcast %cst : f32 to vector<16x256xf32>
    %c0 = arith.constant 0 : index
    %c0_0 = arith.constant 0 : index
    %c0_1 = arith.constant 0 : index
    %1 = vector.load %arg1[%c0, %c0_0, %c0_1] : memref<10x16x256xf32, #tpu.memory_space<vmem>>, vector<1x16x256xf32>
    %2 = vector.shape_cast %1 : vector<1x16x256xf32> to vector<16x256xf32>
    %3 = arith.truncf %2 : vector<16x256xf32> to vector<16x256xbf16>
    %c0_2 = arith.constant 0 : index
    %c0_3 = arith.constant 0 : index
    %c0_4 = arith.constant 0 : index
    %4 = vector.load %arg2[%c0_2, %c0_3, %c0_4] : memref<10x256x256xbf16, #tpu.memory_space<vmem>>, vector<1x256x256xbf16>
    %5 = vector.shape_cast %4 : vector<1x256x256xbf16> to vector<256x256xbf16>
    %cst_5 = arith.constant dense<0.000000e+00> : vector<16x256xf32>
    %6 = tpu.matmul %3, %5, %cst_5 {dimension_numbers = #tpu.dot_dimension_numbers<[1], [0], [0], [1], [0, 0, 1, 1], [], []>} : vector<16x256xbf16>, vector<256x256xbf16>, vector<16x256xf32> -> vector<16x256xf32>
    %7 = arith.addf %0, %6 : vector<16x256xf32>
    %c1 = arith.constant 1 : index
    %c0_6 = arith.constant 0 : index
    %c0_7 = arith.constant 0 : index
    %8 = vector.load %arg1[%c1, %c0_6, %c0_7] : memref<10x16x256xf32, #tpu.memory_space<vmem>>, vector<1x16x256xf32>
    %9 = vector.shape_cast %8 : vector<1x16x256xf32> to vector<16x256xf32>
    %10 = arith.truncf %9 : vector<16x256xf32> to vector<16x256xbf16>
    %c1_8 = arith.constant 1 : index
    %c0_9 = arith.constant 0 : index
    %c0_10 = arith.constant 0 : index
    %11 = vector.load %arg2[%c1_8, %c0_9, %c0_10] : memref<10x256x256xbf16, #tpu.memory_space<vmem>>, vector<1x256x256xbf16>
    %12 = vector.shape_cast %11 : vector<1x256x256xbf16> to vector<256x256xbf16>
    %cst_11 = arith.constant dense<0.000000e+00> : vector<16x256xf32>
    %13 = tpu.matmul %10, %12, %cst_11 {dimension_numbers = #tpu.dot_dimension_numbers<[1], [0], [0], [1], [0, 0, 1, 1], [], []>} : vector<16x256xbf16>, vector<256x256xbf16>, vector<16x256xf32> -> vector<16x256xf32>
    %14 = arith.addf %7, %13 : vector<16x256xf32>
    %c2 = arith.constant 2 : index
    %c0_12 = arith.constant 0 : index
    %c0_13 = arith.constant 0 : index
    %15 = vector.load %arg1[%c2, %c0_12, %c0_13] : memref<10x16x256xf32, #tpu.memory_space<vmem>>, vector<1x16x256xf32>
    %16 = vector.shape_cast %15 : vector<1x16x256xf32> to vector<16x256xf32>
    %17 = arith.truncf %16 : vector<16x256xf32> to vector<16x256xbf16>
    %c2_14 = arith.constant 2 : index
    %c0_15 = arith.constant 0 : index
    %c0_16 = arith.constant 0 : index
    %18 = vector.load %arg2[%c2_14, %c0_15, %c0_16] : memref<10x256x256xbf16, #tpu.memory_space<vmem>>, vector<1x256x256xbf16>
    %19 = vector.shape_cast %18 : vector<1x256x256xbf16> to vector<256x256xbf16>
    %cst_17 = arith.constant dense<0.000000e+00> : vector<16x256xf32>
    %20 = tpu.matmul %17, %19, %cst_17 {dimension_numbers = #tpu.dot_dimension_numbers<[1], [0], [0], [1], [0, 0, 1, 1], [], []>} : vector<16x256xbf16>, vector<256x256xbf16>, vector<16x256xf32> -> vector<16x256xf32>
    %21 = arith.addf %14, %20 : vector<16x256xf32>
    %c3 = arith.constant 3 : index
    %c0_18 = arith.constant 0 : index
    %c0_19 = arith.constant 0 : index
    %22 = vector.load %arg1[%c3, %c0_18, %c0_19] : memref<10x16x256xf32, #tpu.memory_space<vmem>>, vector<1x16x256xf32>
    %23 = vector.shape_cast %22 : vector<1x16x256xf32> to vector<16x256xf32>
    %24 = arith.truncf %23 : vector<16x256xf32> to vector<16x256xbf16>
    %c3_20 = arith.constant 3 : index
    %c0_21 = arith.constant 0 : index
    %c0_22 = arith.constant 0 : index
    %25 = vector.load %arg2[%c3_20, %c0_21, %c0_22] : memref<10x256x256xbf16, #tpu.memory_space<vmem>>, vector<1x256x256xbf16>
    %26 = vector.shape_cast %25 : vector<1x256x256xbf16> to vector<256x256xbf16>
    %cst_23 = arith.constant dense<0.000000e+00> : vector<16x256xf32>
    %27 = tpu.matmul %24, %26, %cst_23 {dimension_numbers = #tpu.dot_dimension_numbers<[1], [0], [0], [1], [0, 0, 1, 1], [], []>} : vector<16x256xbf16>, vector<256x256xbf16>, vector<16x256xf32> -> vector<16x256xf32>
    %28 = arith.addf %21, %27 : vector<16x256xf32>
    %c4 = arith.constant 4 : index
    %c0_24 = arith.constant 0 : index
    %c0_25 = arith.constant 0 : index
    %29 = vector.load %arg1[%c4, %c0_24, %c0_25] : memref<10x16x256xf32, #tpu.memory_space<vmem>>, vector<1x16x256xf32>
    %30 = vector.shape_cast %29 : vector<1x16x256xf32> to vector<16x256xf32>
    %31 = arith.truncf %30 : vector<16x256xf32> to vector<16x256xbf16>
    %c4_26 = arith.constant 4 : index
    %c0_27 = arith.constant 0 : index
    %c0_28 = arith.constant 0 : index
    %32 = vector.load %arg2[%c4_26, %c0_27, %c0_28] : memref<10x256x256xbf16, #tpu.memory_space<vmem>>, vector<1x256x256xbf16>
    %33 = vector.shape_cast %32 : vector<1x256x256xbf16> to vector<256x256xbf16>
    %cst_29 = arith.constant dense<0.000000e+00> : vector<16x256xf32>
    %34 = tpu.matmul %31, %33, %cst_29 {dimension_numbers = #tpu.dot_dimension_numbers<[1], [0], [0], [1], [0, 0, 1, 1], [], []>} : vector<16x256xbf16>, vector<256x256xbf16>, vector<16x256xf32> -> vector<16x256xf32>
    %35 = arith.addf %28, %34 : vector<16x256xf32>
    %c5 = arith.constant 5 : index
    %c0_30 = arith.constant 0 : index
    %c0_31 = arith.constant 0 : index
    %36 = vector.load %arg1[%c5, %c0_30, %c0_31] : memref<10x16x256xf32, #tpu.memory_space<vmem>>, vector<1x16x256xf32>
    %37 = vector.shape_cast %36 : vector<1x16x256xf32> to vector<16x256xf32>
    %38 = arith.truncf %37 : vector<16x256xf32> to vector<16x256xbf16>
    %c5_32 = arith.constant 5 : index
    %c0_33 = arith.constant 0 : index
    %c0_34 = arith.constant 0 : index
    %39 = vector.load %arg2[%c5_32, %c0_33, %c0_34] : memref<10x256x256xbf16, #tpu.memory_space<vmem>>, vector<1x256x256xbf16>
    %40 = vector.shape_cast %39 : vector<1x256x256xbf16> to vector<256x256xbf16>
    %cst_35 = arith.constant dense<0.000000e+00> : vector<16x256xf32>
    %41 = tpu.matmul %38, %40, %cst_35 {dimension_numbers = #tpu.dot_dimension_numbers<[1], [0], [0], [1], [0, 0, 1, 1], [], []>} : vector<16x256xbf16>, vector<256x256xbf16>, vector<16x256xf32> -> vector<16x256xf32>
    %42 = arith.addf %35, %41 : vector<16x256xf32>
    %c6 = arith.constant 6 : index
    %c0_36 = arith.constant 0 : index
    %c0_37 = arith.constant 0 : index
    %43 = vector.load %arg1[%c6, %c0_36, %c0_37] : memref<10x16x256xf32, #tpu.memory_space<vmem>>, vector<1x16x256xf32>
    %44 = vector.shape_cast %43 : vector<1x16x256xf32> to vector<16x256xf32>
    %45 = arith.truncf %44 : vector<16x256xf32> to vector<16x256xbf16>
    %c6_38 = arith.constant 6 : index
    %c0_39 = arith.constant 0 : index
    %c0_40 = arith.constant 0 : index
    %46 = vector.load %arg2[%c6_38, %c0_39, %c0_40] : memref<10x256x256xbf16, #tpu.memory_space<vmem>>, vector<1x256x256xbf16>
    %47 = vector.shape_cast %46 : vector<1x256x256xbf16> to vector<256x256xbf16>
    %cst_41 = arith.constant dense<0.000000e+00> : vector<16x256xf32>
    %48 = tpu.matmul %45, %47, %cst_41 {dimension_numbers = #tpu.dot_dimension_numbers<[1], [0], [0], [1], [0, 0, 1, 1], [], []>} : vector<16x256xbf16>, vector<256x256xbf16>, vector<16x256xf32> -> vector<16x256xf32>
    %49 = arith.addf %42, %48 : vector<16x256xf32>
    %c7 = arith.constant 7 : index
    %c0_42 = arith.constant 0 : index
    %c0_43 = arith.constant 0 : index
    %50 = vector.load %arg1[%c7, %c0_42, %c0_43] : memref<10x16x256xf32, #tpu.memory_space<vmem>>, vector<1x16x256xf32>
    %51 = vector.shape_cast %50 : vector<1x16x256xf32> to vector<16x256xf32>
    %52 = arith.truncf %51 : vector<16x256xf32> to vector<16x256xbf16>
    %c7_44 = arith.constant 7 : index
    %c0_45 = arith.constant 0 : index
    %c0_46 = arith.constant 0 : index
    %53 = vector.load %arg2[%c7_44, %c0_45, %c0_46] : memref<10x256x256xbf16, #tpu.memory_space<vmem>>, vector<1x256x256xbf16>
    %54 = vector.shape_cast %53 : vector<1x256x256xbf16> to vector<256x256xbf16>
    %cst_47 = arith.constant dense<0.000000e+00> : vector<16x256xf32>
    %55 = tpu.matmul %52, %54, %cst_47 {dimension_numbers = #tpu.dot_dimension_numbers<[1], [0], [0], [1], [0, 0, 1, 1], [], []>} : vector<16x256xbf16>, vector<256x256xbf16>, vector<16x256xf32> -> vector<16x256xf32>
    %56 = arith.addf %49, %55 : vector<16x256xf32>
    %c8 = arith.constant 8 : index
    %c0_48 = arith.constant 0 : index
    %c0_49 = arith.constant 0 : index
    %57 = vector.load %arg1[%c8, %c0_48, %c0_49] : memref<10x16x256xf32, #tpu.memory_space<vmem>>, vector<1x16x256xf32>
    %58 = vector.shape_cast %57 : vector<1x16x256xf32> to vector<16x256xf32>
    %59 = arith.truncf %58 : vector<16x256xf32> to vector<16x256xbf16>
    %c8_50 = arith.constant 8 : index
    %c0_51 = arith.constant 0 : index
    %c0_52 = arith.constant 0 : index
    %60 = vector.load %arg2[%c8_50, %c0_51, %c0_52] : memref<10x256x256xbf16, #tpu.memory_space<vmem>>, vector<1x256x256xbf16>
    %61 = vector.shape_cast %60 : vector<1x256x256xbf16> to vector<256x256xbf16>
    %cst_53 = arith.constant dense<0.000000e+00> : vector<16x256xf32>
    %62 = tpu.matmul %59, %61, %cst_53 {dimension_numbers = #tpu.dot_dimension_numbers<[1], [0], [0], [1], [0, 0, 1, 1], [], []>} : vector<16x256xbf16>, vector<256x256xbf16>, vector<16x256xf32> -> vector<16x256xf32>
    %63 = arith.addf %56, %62 : vector<16x256xf32>
    %c9 = arith.constant 9 : index
    %c0_54 = arith.constant 0 : index
    %c0_55 = arith.constant 0 : index
    %64 = vector.load %arg1[%c9, %c0_54, %c0_55] : memref<10x16x256xf32, #tpu.memory_space<vmem>>, vector<1x16x256xf32>
    %65 = vector.shape_cast %64 : vector<1x16x256xf32> to vector<16x256xf32>
    %66 = arith.truncf %65 : vector<16x256xf32> to vector<16x256xbf16>
    %c9_56 = arith.constant 9 : index
    %c0_57 = arith.constant 0 : index
    %c0_58 = arith.constant 0 : index
    %67 = vector.load %arg2[%c9_56, %c0_57, %c0_58] : memref<10x256x256xbf16, #tpu.memory_space<vmem>>, vector<1x256x256xbf16>
    %68 = vector.shape_cast %67 : vector<1x256x256xbf16> to vector<256x256xbf16>
    %cst_59 = arith.constant dense<0.000000e+00> : vector<16x256xf32>
    %69 = tpu.matmul %66, %68, %cst_59 {dimension_numbers = #tpu.dot_dimension_numbers<[1], [0], [0], [1], [0, 0, 1, 1], [], []>} : vector<16x256xbf16>, vector<256x256xbf16>, vector<16x256xf32> -> vector<16x256xf32>
    %70 = arith.addf %63, %69 : vector<16x256xf32>
    %cst_60 = arith.constant dense<0.000000e+00> : vector<256xf32>
    %71 = vector.multi_reduction <add>, %70, %cst_60 [0] : vector<16x256xf32> to vector<256xf32>
    %72 = vector.shape_cast %71 : vector<256xf32> to vector<1x256xf32>
    %73 = arith.mulf %70, %70 : vector<16x256xf32>
    %cst_61 = arith.constant dense<0.000000e+00> : vector<256xf32>
    %74 = vector.multi_reduction <add>, %73, %cst_61 [0] : vector<16x256xf32> to vector<256xf32>
    %75 = vector.shape_cast %74 : vector<256xf32> to vector<1x256xf32>
    %cst_62 = arith.constant 0.0833333358 : f32
    %76 = vector.broadcast %cst_62 : f32 to vector<1x256xf32>
    %77 = arith.mulf %72, %76 : vector<1x256xf32>
    %cst_63 = arith.constant 0.0833333358 : f32
    %78 = vector.broadcast %cst_63 : f32 to vector<1x256xf32>
    %79 = arith.mulf %75, %78 : vector<1x256xf32>
    %80 = arith.mulf %77, %77 : vector<1x256xf32>
    %81 = arith.subf %79, %80 : vector<1x256xf32>
    %c0_64 = arith.constant 0 : index
    %c0_65 = arith.constant 0 : index
    %82 = vector.load %arg3[%c0_64, %c0_65] : memref<1x256xf32, #tpu.memory_space<vmem>>, vector<1x256xf32>
    %cst_66 = arith.constant 9.99999974E-6 : f32
    %83 = vector.broadcast %cst_66 : f32 to vector<1x256xf32>
    %84 = arith.addf %81, %83 : vector<1x256xf32>
    %85 = math.rsqrt %84 : vector<1x256xf32>
    %86 = arith.mulf %82, %85 : vector<1x256xf32>
    %c0_67 = arith.constant 0 : index
    %c0_68 = arith.constant 0 : index
    %87 = vector.load %arg4[%c0_67, %c0_68] : memref<1x256xf32, #tpu.memory_space<vmem>>, vector<1x256xf32>
    %88 = arith.mulf %77, %86 : vector<1x256xf32>
    %89 = arith.subf %87, %88 : vector<1x256xf32>
    %90 = vector.broadcast %86 : vector<1x256xf32> to vector<16x256xf32>
    %91 = arith.mulf %70, %90 : vector<16x256xf32>
    %92 = vector.broadcast %89 : vector<1x256xf32> to vector<16x256xf32>
    %93 = arith.addf %91, %92 : vector<16x256xf32>
    %c0_69 = arith.constant 0 : index
    %c0_70 = arith.constant 0 : index
    %94 = vector.load %arg5[%c0_69, %c0_70] : memref<16x256xf32, #tpu.memory_space<vmem>>, vector<16x256xf32>
    tpu.vector_store %arg5[%c0_69, %c0_70], %93 {strides = array<i32>} : memref<16x256xf32, #tpu.memory_space<vmem>>, vector<16x256xf32>,
    return
  }
  func.func @transform_0(%arg0: i32) -> (i32, i32, i32) {
    %c0_i32 = arith.constant 0 : i32
    %c0_i32_0 = arith.constant 0 : i32
    %c0_i32_1 = arith.constant 0 : i32
    %c0_i32_2 = arith.constant 0 : i32
    return %c0_i32, %c0_i32_0, %c0_i32_1 : i32, i32, i32
  }
  func.func @transform_1(%arg0: i32) -> (i32, i32, i32) {
    %c0_i32 = arith.constant 0 : i32
    %c0_i32_0 = arith.constant 0 : i32
    %c0_i32_1 = arith.constant 0 : i32
    %c0_i32_2 = arith.constant 0 : i32
    return %c0_i32, %c0_i32_0, %c0_i32_1 : i32, i32, i32
  }
  func.func @transform_2(%arg0: i32) -> (i32, i32) {
    %c0_i32 = arith.constant 0 : i32
    %c0_i32_0 = arith.constant 0 : i32
    %c0_i32_1 = arith.constant 0 : i32
    return %c0_i32, %c0_i32_0 : i32, i32
  }
  func.func @transform_3(%arg0: i32) -> (i32, i32) {
    %c0_i32 = arith.constant 0 : i32
    %c0_i32_0 = arith.constant 0 : i32
    %c0_i32_1 = arith.constant 0 : i32
    return %c0_i32, %c0_i32_0 : i32, i32
  }
  func.func @transform_4(%arg0: i32) -> (i32, i32) {
    %c0_i32 = arith.constant 0 : i32
    %c0_i32_0 = arith.constant 0 : i32
    %c0_i32_1 = arith.constant 0 : i32
    return %c0_i32, %c0_i32_0 : i32, i32
  }
}

</mosaic_0001>

<llo_original>
// kernel: tpu_custom_call.1
$region0: #{tpu_custom_call.1}
  #allocation0 [shape = 'u32[]', space=smem, size = 0x4, offset = 0x4, fixed_abs, tag = 'smem constant byte address 0x4 - core index']
  #allocation1 [shape = 'u32[144,128]{1,0:T(1,128)}', space=vmem, size = 0x12000, scoped, tag = 'internal scratch']
  %s0 = inlined_call_operand.hbm [shape: f32[10,16,256], index: 0, kind: input, shape index: {}]
  %s1 = inlined_call_operand.hbm [shape: bf16[10,256,256], index: 1, kind: input, shape index: {}]
  %s2 = inlined_call_operand.hbm [shape: f32[1,256], index: 2, kind: input, shape index: {}]
  %s3 = inlined_call_operand.hbm [shape: f32[1,256], index: 3, kind: input, shape index: {}]
  %s4 = inlined_call_operand.hbm [shape: f32[16,256], index: 4, kind: output, shape index: {}]
  %s5 = sld [smem:[#allocation0]]
  $region42: #{tpu_custom_call.1} parent=0
    _
  %s7 = ssub.s32 1, %s5
  %s8 = scalar_select 0, %s7, %s5
  $region1: #{tpu_custom_call.1} parent=0
    #allocation2 [shape = 'u8[163840]{0}', space=vmem, size = 0x28000, scoped, tag = 'input window, operand 0, single buffered']
    #allocation3 [shape = 's32[1]{0}', space=sflag, size = 0x4, scoped, tag = 'scoped memory for tpu_custom_call.1']
    #allocation4 [shape = 's32[1]{0}', space=sflag, size = 0x4, scoped, tag = 'scoped memory for tpu_custom_call.1']
    #allocation5 [shape = 'u8[1310720]{0}', space=vmem, size = 0x140000, scoped, tag = 'input window, operand 1, single buffered']
    #allocation6 [shape = 's32[1]{0}', space=sflag, size = 0x4, scoped, tag = 'scoped memory for tpu_custom_call.1']
    #allocation7 [shape = 'u8[1024]{0}', space=vmem, size = 0x400, scoped, tag = 'input window, operand 2, single buffered']
    #allocation8 [shape = 'u8[1024]{0}', space=vmem, size = 0x400, scoped, tag = 'input window, operand 3, single buffered']
    #allocation9 [shape = 's32[1]{0}', space=sflag, size = 0x4, scoped, tag = 'scoped memory for tpu_custom_call.1']
    #allocation10 [shape = 'u8[16384]{0}', space=vmem, size = 0x4000, scoped, tag = 'output window, operand 0, single buffered']
    %9 = vsyncpa [#allocation3], 0
    %10 = vsyncpa [#allocation6], 0
    %11 = vsyncpa [#allocation9], 0
    %12 = vsyncpa [#allocation4], 0
    // Predicated region
    $region2: #{tpu_custom_call.1} parent=1 // pred_check
      _
    $region3: #{tpu_custom_call.1} parent=1 // pred_check_branch
      %14 = sbr.rel (0) target = $region5
    $region4: #{tpu_custom_call.1} parent=1 // pred_region
      %s16 = ssub.s32 5120, 5120
      %17 = vsyncadd [#allocation3], %s16
      %s18 = sshll.u32 [#allocation2], 4
      %s19 = int_to_ptr.vmem [resolvable:$true] %s18
      %24 = dma.hbm_to_vmem [thread:$0]  %s0, 5120, %s19, [#allocation3], 256, 256, 16
    $region5: #{tpu_custom_call.1} parent=1 // pred_fallthru
      _
    // Predicated region
    $region6: #{tpu_custom_call.1} parent=1 // pred_check
      _
    $region7: #{tpu_custom_call.1} parent=1 // pred_check_branch
      %26 = sbr.rel (0) target = $region9
    $region8: #{tpu_custom_call.1} parent=1 // pred_region
      %s28 = ssub.s32 40960, 40960
      %29 = vsyncadd [#allocation6], %s28
      %s30 = sshll.u32 [#allocation5], 4
      %s31 = int_to_ptr.vmem [resolvable:$true] %s30
      %36 = dma.hbm_to_vmem [thread:$0]  %s1, 40960, %s31, [#allocation6], 128, 128, 8
    $region9: #{tpu_custom_call.1} parent=1 // pred_fallthru
      _
    // Predicated region
    $region10: #{tpu_custom_call.1} parent=1 // pred_check
      _
    $region11: #{tpu_custom_call.1} parent=1 // pred_check_branch
      %38 = sbr.rel (0) target = $region13
    $region12: #{tpu_custom_call.1} parent=1 // pred_region
      %s40 = ssub.s32 32, 32
      %41 = vsyncadd [#allocation6], %s40
      %s43 = sshll.u32 [#allocation7], 4
      %s44 = int_to_ptr.vmem [resolvable:$true] %s43
      %46 = dma.hbm_to_vmem [thread:$0]  %s2, 32, %s44, [#allocation6]
    $region13: #{tpu_custom_call.1} parent=1 // pred_fallthru
      _
    // Predicated region
    $region14: #{tpu_custom_call.1} parent=1 // pred_check
      _
    $region15: #{tpu_custom_call.1} parent=1 // pred_check_branch
      %48 = sbr.rel (0) target = $region17
    $region16: #{tpu_custom_call.1} parent=1 // pred_region
      %s50 = ssub.s32 32, 32
      %51 = vsyncadd [#allocation9], %s50
      %s53 = sshll.u32 [#allocation8], 4
      %s54 = int_to_ptr.vmem [resolvable:$true] %s53
      %56 = dma.hbm_to_vmem [thread:$0]  %s3, 32, %s54, [#allocation9]
    $region17: #{tpu_custom_call.1} parent=1 // pred_fallthru
      _
    // Predicated region
    $region18: #{tpu_custom_call.1} parent=1 // pred_check
      _
    $region19: #{tpu_custom_call.1} parent=1 // pred_check_branch
      %58 = sbr.rel (0) target = $region21
    $region20: #{tpu_custom_call.1} parent=1 // pred_region
      %59 = dma.done [#allocation3], 5120
    $region21: #{tpu_custom_call.1} parent=1 // pred_fallthru
      _
    // Predicated region
    $region22: #{tpu_custom_call.1} parent=1 // pred_check
      _
    $region23: #{tpu_custom_call.1} parent=1 // pred_check_branch
      %61 = sbr.rel (0) target = $region25
    $region24: #{tpu_custom_call.1} parent=1 // pred_region
      %62 = dma.done [#allocation6], 40960
    $region25: #{tpu_custom_call.1} parent=1 // pred_fallthru
      _
    // Predicated region
    $region26: #{tpu_custom_call.1} parent=1 // pred_check
      _
    $region27: #{tpu_custom_call.1} parent=1 // pred_check_branch
      %64 = sbr.rel (0) target = $region29
    $region28: #{tpu_custom_call.1} parent=1 // pred_region
      %65 = dma.done [#allocation6], 32
    $region29: #{tpu_custom_call.1} parent=1 // pred_fallthru
      _
    // Predicated region
    $region30: #{tpu_custom_call.1} parent=1 // pred_check
      _
    $region31: #{tpu_custom_call.1} parent=1 // pred_check_branch
      %67 = sbr.rel (0) target = $region33
    $region32: #{tpu_custom_call.1} parent=1 // pred_region
      %68 = dma.done [#allocation9], 32
    $region33: #{tpu_custom_call.1} parent=1 // pred_fallthru
      _
    %v69 = vld [vmem:[#allocation2] sm:$0xff]
    %v70 = vld [vmem:[#allocation2 + $0x8] sm:$0xff]
    %v71 = vld [vmem:[#allocation2 + $0x10] sm:$0xff]
    %v72 = vld [vmem:[#allocation2 + $0x18] sm:$0xff]
    %v73 = vpack.c.bf16 %v71, %v69
    %v74 = vpack.c.bf16 %v72, %v70
    %v75 = vld [vmem:[#allocation5] sm:$0xff]
    %v76 = vld [vmem:[#allocation5 + $0x8] sm:$0xff]
    %v77 = vld [vmem:[#allocation5 + $0x10] sm:$0xff]
    %v78 = vld [vmem:[#allocation5 + $0x18] sm:$0xff]
    %v79 = vld [vmem:[#allocation5 + $0x20] sm:$0xff]
    %v80 = vld [vmem:[#allocation5 + $0x28] sm:$0xff]
    %v81 = vld [vmem:[#allocation5 + $0x30] sm:$0xff]
    %v82 = vld [vmem:[#allocation5 + $0x38] sm:$0xff]
    %v83 = vld [vmem:[#allocation5 + $0x40] sm:$0xff]
    %v84 = vld [vmem:[#allocation5 + $0x48] sm:$0xff]
    %v85 = vld [vmem:[#allocation5 + $0x50] sm:$0xff]
    %v86 = vld [vmem:[#allocation5 + $0x58] sm:$0xff]
    %v87 = vld [vmem:[#allocation5 + $0x60] sm:$0xff]
    %v88 = vld [vmem:[#allocation5 + $0x68] sm:$0xff]
    %v89 = vld [vmem:[#allocation5 + $0x70] sm:$0xff]
    %v90 = vld [vmem:[#allocation5 + $0x78] sm:$0xff]
    %v91 = vld [vmem:[#allocation5 + $0x80] sm:$0xff]
    %v92 = vld [vmem:[#allocation5 + $0x88] sm:$0xff]
    %v93 = vld [vmem:[#allocation5 + $0x90] sm:$0xff]
    %v94 = vld [vmem:[#allocation5 + $0x98] sm:$0xff]
    %v95 = vld [vmem:[#allocation5 + $0xa0] sm:$0xff]
    %v96 = vld [vmem:[#allocation5 + $0xa8] sm:$0xff]
    %v97 = vld [vmem:[#allocation5 + $0xb0] sm:$0xff]
    %v98 = vld [vmem:[#allocation5 + $0xb8] sm:$0xff]
    %v99 = vld [vmem:[#allocation5 + $0xc0] sm:$0xff]
    %v100 = vld [vmem:[#allocation5 + $0xc8] sm:$0xff]
    %v101 = vld [vmem:[#allocation5 + $0xd0] sm:$0xff]
    %v102 = vld [vmem:[#allocation5 + $0xd8] sm:$0xff]
    %v103 = vld [vmem:[#allocation5 + $0xe0] sm:$0xff]
    %v104 = vld [vmem:[#allocation5 + $0xe8] sm:$0xff]
    %v105 = vld [vmem:[#allocation5 + $0xf0] sm:$0xff]
    %v106 = vld [vmem:[#allocation5 + $0xf8] sm:$0xff]
    %s107 = scalar_lea.vmem [#allocation2], 32
    %v108 = vld [vmem:[%s107] sm:$0xff]
    %v109 = vld [vmem:[%s107 + $0x8] sm:$0xff]
    %v110 = vld [vmem:[%s107 + $0x10] sm:$0xff]
    %v111 = vld [vmem:[%s107 + $0x18] sm:$0xff]
    %v112 = vpack.c.bf16 %v110, %v108
    %v113 = vpack.c.bf16 %v111, %v109
    %s114 = scalar_lea.vmem [#allocation5], 256
    %v115 = vld [vmem:[%s114] sm:$0xff]
    %v116 = vld [vmem:[%s114 + $0x8] sm:$0xff]
    %v117 = vld [vmem:[%s114 + $0x10] sm:$0xff]
    %v118 = vld [vmem:[%s114 + $0x18] sm:$0xff]
    %v119 = vld [vmem:[%s114 + $0x20] sm:$0xff]
    %v120 = vld [vmem:[%s114 + $0x28] sm:$0xff]
    %v121 = vld [vmem:[%s114 + $0x30] sm:$0xff]
    %v122 = vld [vmem:[%s114 + $0x38] sm:$0xff]
    %v123 = vld [vmem:[%s114 + $0x40] sm:$0xff]
    %v124 = vld [vmem:[%s114 + $0x48] sm:$0xff]
    %v125 = vld [vmem:[%s114 + $0x50] sm:$0xff]
    %v126 = vld [vmem:[%s114 + $0x58] sm:$0xff]
    %v127 = vld [vmem:[%s114 + $0x60] sm:$0xff]
    %v128 = vld [vmem:[%s114 + $0x68] sm:$0xff]
    %v129 = vld [vmem:[%s114 + $0x70] sm:$0xff]
    %v130 = vld [vmem:[%s114 + $0x78] sm:$0xff]
    %v131 = vld [vmem:[%s114 + $0x80] sm:$0xff]
    %v132 = vld [vmem:[%s114 + $0x88] sm:$0xff]
    %v133 = vld [vmem:[%s114 + $0x90] sm:$0xff]
    %v134 = vld [vmem:[%s114 + $0x98] sm:$0xff]
    %v135 = vld [vmem:[%s114 + $0xa0] sm:$0xff]
    %v136 = vld [vmem:[%s114 + $0xa8] sm:$0xff]
    %v137 = vld [vmem:[%s114 + $0xb0] sm:$0xff]
    %v138 = vld [vmem:[%s114 + $0xb8] sm:$0xff]
    %v139 = vld [vmem:[%s114 + $0xc0] sm:$0xff]
    %v140 = vld [vmem:[%s114 + $0xc8] sm:$0xff]
    %v141 = vld [vmem:[%s114 + $0xd0] sm:$0xff]
    %v142 = vld [vmem:[%s114 + $0xd8] sm:$0xff]
    %v143 = vld [vmem:[%s114 + $0xe0] sm:$0xff]
    %v144 = vld [vmem:[%s114 + $0xe8] sm:$0xff]
    %v145 = vld [vmem:[%s114 + $0xf0] sm:$0xff]
    %v146 = vld [vmem:[%s114 + $0xf8] sm:$0xff]
    %v179 = vunpack.c.l.b16 %v115
    %v180 = vunpack.c.h.b16 %v115
    %v181 = vunpack.c.l.b16 %v116
    %v182 = vunpack.c.h.b16 %v116
    %v183 = vunpack.c.l.b16 %v117
    %v184 = vunpack.c.h.b16 %v117
    %v185 = vunpack.c.l.b16 %v118
    %v186 = vunpack.c.h.b16 %v118
    %v187 = vunpack.c.l.b16 %v119
    %v188 = vunpack.c.h.b16 %v119
    %v189 = vunpack.c.l.b16 %v120
    %v190 = vunpack.c.h.b16 %v120
    %v191 = vunpack.c.l.b16 %v121
    %v192 = vunpack.c.h.b16 %v121
    %v193 = vunpack.c.l.b16 %v122
    %v194 = vunpack.c.h.b16 %v122
    %v195 = vunpack.c.l.b16 %v123
    %v196 = vunpack.c.h.b16 %v123
    %v197 = vunpack.c.l.b16 %v124
    %v198 = vunpack.c.h.b16 %v124
    %v199 = vunpack.c.l.b16 %v125
    %v200 = vunpack.c.h.b16 %v125
    %v201 = vunpack.c.l.b16 %v126
    %v202 = vunpack.c.h.b16 %v126
    %v203 = vunpack.c.l.b16 %v127
    %v204 = vunpack.c.h.b16 %v127
    %v205 = vunpack.c.l.b16 %v128
    %v206 = vunpack.c.h.b16 %v128
    %v207 = vunpack.c.l.b16 %v129
    %v208 = vunpack.c.h.b16 %v129
    %v209 = vunpack.c.l.b16 %v130
    %v210 = vunpack.c.h.b16 %v130
    %v211 = vunpack.c.l.b16 %v131
    %v212 = vunpack.c.h.b16 %v131
    %v213 = vunpack.c.l.b16 %v132
    %v214 = vunpack.c.h.b16 %v132
    %v215 = vunpack.c.l.b16 %v133
    %v216 = vunpack.c.h.b16 %v133
    %v217 = vunpack.c.l.b16 %v134
    %v218 = vunpack.c.h.b16 %v134
    %v219 = vunpack.c.l.b16 %v135
    %v220 = vunpack.c.h.b16 %v135
    %v221 = vunpack.c.l.b16 %v136
    %v222 = vunpack.c.h.b16 %v136
    %v223 = vunpack.c.l.b16 %v137
    %v224 = vunpack.c.h.b16 %v137
    %v225 = vunpack.c.l.b16 %v138
    %v226 = vunpack.c.h.b16 %v138
    %v227 = vunpack.c.l.b16 %v139
    %v228 = vunpack.c.h.b16 %v139
    %v229 = vunpack.c.l.b16 %v140
    %v230 = vunpack.c.h.b16 %v140
    %v231 = vunpack.c.l.b16 %v141
    %v232 = vunpack.c.h.b16 %v141
    %v233 = vunpack.c.l.b16 %v142
    %v234 = vunpack.c.h.b16 %v142
    %v235 = vunpack.c.l.b16 %v143
    %v236 = vunpack.c.h.b16 %v143
    %v237 = vunpack.c.l.b16 %v144
    %v238 = vunpack.c.h.b16 %v144
    %v239 = vunpack.c.l.b16 %v145
    %v240 = vunpack.c.h.b16 %v145
    %v241 = vunpack.c.l.b16 %v146
    %v242 = vunpack.c.h.b16 %v146
    %v243 = vpack.c.b16 %v181, %v179
    %v244 = vpack.c.b16 %v182, %v180
    %v245 = vpack.c.b16 %v185, %v183
    %v246 = vpack.c.b16 %v186, %v184
    %v247 = vpack.c.b16 %v189, %v187
    %v248 = vpack.c.b16 %v190, %v188
    %v249 = vpack.c.b16 %v193, %v191
    %v250 = vpack.c.b16 %v194, %v192
    %v251 = vpack.c.b16 %v197, %v195
    %v252 = vpack.c.b16 %v198, %v196
    %v253 = vpack.c.b16 %v201, %v199
    %v254 = vpack.c.b16 %v202, %v200
    %v255 = vpack.c.b16 %v205, %v203
    %v256 = vpack.c.b16 %v206, %v204
    %v257 = vpack.c.b16 %v209, %v207
    %v258 = vpack.c.b16 %v210, %v208
    %v259 = vpack.c.b16 %v213, %v211
    %v260 = vpack.c.b16 %v214, %v212
    %v261 = vpack.c.b16 %v217, %v215
    %v262 = vpack.c.b16 %v218, %v216
    %v263 = vpack.c.b16 %v221, %v219
    %v264 = vpack.c.b16 %v222, %v220
    %v265 = vpack.c.b16 %v225, %v223
    %v266 = vpack.c.b16 %v226, %v224
    %v267 = vpack.c.b16 %v229, %v227
    %v268 = vpack.c.b16 %v230, %v228
    %v269 = vpack.c.b16 %v233, %v231
    %v270 = vpack.c.b16 %v234, %v232
    %v271 = vpack.c.b16 %v237, %v235
    %v272 = vpack.c.b16 %v238, %v236
    %v273 = vpack.c.b16 %v241, %v239
    %v274 = vpack.c.b16 %v242, %v240
    %307 = vmatprep.subr.bf16.mxu0 %v244
    %308 = vmatpush1.bf16.msra.mxu0 %v243
    %309 = vmatprep.subr.bf16.mxu0 %v246
    %310 = vmatpush1.bf16.msra.mxu0 %v245
    %311 = vmatprep.subr.bf16.mxu0 %v248
    %312 = vmatpush1.bf16.msra.mxu0 %v247
    %313 = vmatprep.subr.bf16.mxu0 %v250
    %314 = vmatpush1.bf16.msra.mxu0 %v249
    %315 = vmatprep.subr.bf16.mxu0 %v252
    %316 = vmatpush1.bf16.msra.mxu0 %v251
    %317 = vmatprep.subr.bf16.mxu0 %v254
    %318 = vmatpush1.bf16.msra.mxu0 %v253
    %319 = vmatprep.subr.bf16.mxu0 %v256
    %320 = vmatpush1.bf16.msra.mxu0 %v255
    %321 = vmatprep.subr.bf16.mxu0 %v258
    %322 = vmatpush1.bf16.msra.mxu0 %v257
    %323 = vmatprep.subr.bf16.mxu0 %v260
    %324 = vmatpush1.bf16.msra.mxu0 %v259
    %325 = vmatprep.subr.bf16.mxu0 %v262
    %326 = vmatpush1.bf16.msra.mxu0 %v261
    %327 = vmatprep.subr.bf16.mxu0 %v264
    %328 = vmatpush1.bf16.msra.mxu0 %v263
    %329 = vmatprep.subr.bf16.mxu0 %v266
    %330 = vmatpush1.bf16.msra.mxu0 %v265
    %331 = vmatprep.subr.bf16.mxu0 %v268
    %332 = vmatpush1.bf16.msra.mxu0 %v267
    %333 = vmatprep.subr.bf16.mxu0 %v270
    %334 = vmatpush1.bf16.msra.mxu0 %v269
    %335 = vmatprep.subr.bf16.mxu0 %v272
    %336 = vmatpush1.bf16.msra.mxu0 %v271
    %337 = vmatprep.subr.bf16.mxu0 %v274
    %338 = vmatpush1.bf16.msra.mxu0 %v273
    %339 = vmatprep.mubr.bf16.mxu0 %v113
    %340 = vmatmul.mubr.bf16.gmra.mrb[0].mxu0 %v112
    %v341 = vpop.f32.mrb[0].mxu0
    %v342 = vadd.f32 0.0, %v341
    %v343 = vpop.f32.mrb[0].mxu0
    %v344 = vadd.f32 0.0, %v343
    %v345 = vpop.f32.mrb[0].mxu0
    %v346 = vadd.f32 0.0, %v345
    %v347 = vpop.f32.mrb[0].mxu0
    %v348 = vadd.f32 0.0, %v347
    %349 = vdwg.mxu0
    %v382 = vunpack.c.l.b16 %v75
    %v383 = vunpack.c.h.b16 %v75
    %v384 = vunpack.c.l.b16 %v76
    %v385 = vunpack.c.h.b16 %v76
    %v386 = vunpack.c.l.b16 %v77
    %v387 = vunpack.c.h.b16 %v77
    %v388 = vunpack.c.l.b16 %v78
    %v389 = vunpack.c.h.b16 %v78
    %v390 = vunpack.c.l.b16 %v79
    %v391 = vunpack.c.h.b16 %v79
    %v392 = vunpack.c.l.b16 %v80
    %v393 = vunpack.c.h.b16 %v80
    %v394 = vunpack.c.l.b16 %v81
    %v395 = vunpack.c.h.b16 %v81
    %v396 = vunpack.c.l.b16 %v82
    %v397 = vunpack.c.h.b16 %v82
    %v398 = vunpack.c.l.b16 %v83
    %v399 = vunpack.c.h.b16 %v83
    %v400 = vunpack.c.l.b16 %v84
    %v401 = vunpack.c.h.b16 %v84
    %v402 = vunpack.c.l.b16 %v85
    %v403 = vunpack.c.h.b16 %v85
    %v404 = vunpack.c.l.b16 %v86
    %v405 = vunpack.c.h.b16 %v86
    %v406 = vunpack.c.l.b16 %v87
    %v407 = vunpack.c.h.b16 %v87
    %v408 = vunpack.c.l.b16 %v88
    %v409 = vunpack.c.h.b16 %v88
    %v410 = vunpack.c.l.b16 %v89
    %v411 = vunpack.c.h.b16 %v89
    %v412 = vunpack.c.l.b16 %v90
    %v413 = vunpack.c.h.b16 %v90
    %v414 = vunpack.c.l.b16 %v91
    %v415 = vunpack.c.h.b16 %v91
    %v416 = vunpack.c.l.b16 %v92
    %v417 = vunpack.c.h.b16 %v92
    %v418 = vunpack.c.l.b16 %v93
    %v419 = vunpack.c.h.b16 %v93
    %v420 = vunpack.c.l.b16 %v94
    %v421 = vunpack.c.h.b16 %v94
    %v422 = vunpack.c.l.b16 %v95
    %v423 = vunpack.c.h.b16 %v95
    %v424 = vunpack.c.l.b16 %v96
    %v425 = vunpack.c.h.b16 %v96
    %v426 = vunpack.c.l.b16 %v97
    %v427 = vunpack.c.h.b16 %v97
    %v428 = vunpack.c.l.b16 %v98
    %v429 = vunpack.c.h.b16 %v98
    %v430 = vunpack.c.l.b16 %v99
    %v431 = vunpack.c.h.b16 %v99
    %v432 = vunpack.c.l.b16 %v100
    %v433 = vunpack.c.h.b16 %v100
    %v434 = vunpack.c.l.b16 %v101
    %v435 = vunpack.c.h.b16 %v101
    %v436 = vunpack.c.l.b16 %v102
    %v437 = vunpack.c.h.b16 %v102
    %v438 = vunpack.c.l.b16 %v103
    %v439 = vunpack.c.h.b16 %v103
    %v440 = vunpack.c.l.b16 %v104
    %v441 = vunpack.c.h.b16 %v104
    %v442 = vunpack.c.l.b16 %v105
    %v443 = vunpack.c.h.b16 %v105
    %v444 = vunpack.c.l.b16 %v106
    %v445 = vunpack.c.h.b16 %v106
    %v446 = vpack.c.b16 %v384, %v382
    %v447 = vpack.c.b16 %v385, %v383
    %v448 = vpack.c.b16 %v388, %v386
    %v449 = vpack.c.b16 %v389, %v387
    %v450 = vpack.c.b16 %v392, %v390
    %v451 = vpack.c.b16 %v393, %v391
    %v452 = vpack.c.b16 %v396, %v394
    %v453 = vpack.c.b16 %v397, %v395
    %v454 = vpack.c.b16 %v400, %v398
    %v455 = vpack.c.b16 %v401, %v399
    %v456 = vpack.c.b16 %v404, %v402
    %v457 = vpack.c.b16 %v405, %v403
    %v458 = vpack.c.b16 %v408, %v406
    %v459 = vpack.c.b16 %v409, %v407
    %v460 = vpack.c.b16 %v412, %v410
    %v461 = vpack.c.b16 %v413, %v411
    %v462 = vpack.c.b16 %v416, %v414
    %v463 = vpack.c.b16 %v417, %v415
    %v464 = vpack.c.b16 %v420, %v418
    %v465 = vpack.c.b16 %v421, %v419
    %v466 = vpack.c.b16 %v424, %v422
    %v467 = vpack.c.b16 %v425, %v423
    %v468 = vpack.c.b16 %v428, %v426
    %v469 = vpack.c.b16 %v429, %v427
    %v470 = vpack.c.b16 %v432, %v430
    %v471 = vpack.c.b16 %v433, %v431
    %v472 = vpack.c.b16 %v436, %v434
    %v473 = vpack.c.b16 %v437, %v435
    %v474 = vpack.c.b16 %v440, %v438
    %v475 = vpack.c.b16 %v441, %v439
    %v476 = vpack.c.b16 %v444, %v442
    %v477 = vpack.c.b16 %v445, %v443
    %510 = vmatprep.subr.bf16.mxu0 %v447
    %511 = vmatpush1.bf16.msra.mxu0 %v446
    %512 = vmatprep.subr.bf16.mxu0 %v449
    %513 = vmatpush1.bf16.msra.mxu0 %v448
    %514 = vmatprep.subr.bf16.mxu0 %v451
    %515 = vmatpush1.bf16.msra.mxu0 %v450
    %516 = vmatprep.subr.bf16.mxu0 %v453
    %517 = vmatpush1.bf16.msra.mxu0 %v452
    %518 = vmatprep.subr.bf16.mxu0 %v455
    %519 = vmatpush1.bf16.msra.mxu0 %v454
    %520 = vmatprep.subr.bf16.mxu0 %v457
    %521 = vmatpush1.bf16.msra.mxu0 %v456
    %522 = vmatprep.subr.bf16.mxu0 %v459
    %523 = vmatpush1.bf16.msra.mxu0 %v458
    %524 = vmatprep.subr.bf16.mxu0 %v461
    %525 = vmatpush1.bf16.msra.mxu0 %v460
    %526 = vmatprep.subr.bf16.mxu0 %v463
    %527 = vmatpush1.bf16.msra.mxu0 %v462
    %528 = vmatprep.subr.bf16.mxu0 %v465
    %529 = vmatpush1.bf16.msra.mxu0 %v464
    %530 = vmatprep.subr.bf16.mxu0 %v467
    %531 = vmatpush1.bf16.msra.mxu0 %v466
    %532 = vmatprep.subr.bf16.mxu0 %v469
    %533 = vmatpush1.bf16.msra.mxu0 %v468
    %534 = vmatprep.subr.bf16.mxu0 %v471
    %535 = vmatpush1.bf16.msra.mxu0 %v470
    %536 = vmatprep.subr.bf16.mxu0 %v473
    %537 = vmatpush1.bf16.msra.mxu0 %v472
    %538 = vmatprep.subr.bf16.mxu0 %v475
    %539 = vmatpush1.bf16.msra.mxu0 %v474
    %540 = vmatprep.subr.bf16.mxu0 %v477
    %541 = vmatpush1.bf16.msra.mxu0 %v476
    %542 = vmatprep.mubr.bf16.mxu0 %v74
    %543 = vmatmul.mubr.bf16.gmra.mrb[0].mxu0 %v73
    %v544 = vpop.f32.mrb[0].mxu0
    %v545 = vadd.f32 %v342, %v544
    %v546 = vpop.f32.mrb[0].mxu0
    %v547 = vadd.f32 %v344, %v546
    %v548 = vpop.f32.mrb[0].mxu0
    %v549 = vadd.f32 %v346, %v548
    %v550 = vpop.f32.mrb[0].mxu0
    %v551 = vadd.f32 %v348, %v550
    %552 = vdwg.mxu0
    %s553 = scalar_lea.vmem [#allocation2], 64
    %v554 = vld [vmem:[%s553] sm:$0xff]
    %v555 = vld [vmem:[%s553 + $0x8] sm:$0xff]
    %v556 = vld [vmem:[%s553 + $0x10] sm:$0xff]
    %v557 = vld [vmem:[%s553 + $0x18] sm:$0xff]
    %v558 = vpack.c.bf16 %v556, %v554
    %v559 = vpack.c.bf16 %v557, %v555
    %s560 = scalar_lea.vmem [#allocation5], 512
    %v561 = vld [vmem:[%s560] sm:$0xff]
    %v562 = vld [vmem:[%s560 + $0x8] sm:$0xff]
    %v563 = vld [vmem:[%s560 + $0x10] sm:$0xff]
    %v564 = vld [vmem:[%s560 + $0x18] sm:$0xff]
    %v565 = vld [vmem:[%s560 + $0x20] sm:$0xff]
    %v566 = vld [vmem:[%s560 + $0x28] sm:$0xff]
    %v567 = vld [vmem:[%s560 + $0x30] sm:$0xff]
    %v568 = vld [vmem:[%s560 + $0x38] sm:$0xff]
    %v569 = vld [vmem:[%s560 + $0x40] sm:$0xff]
    %v570 = vld [vmem:[%s560 + $0x48] sm:$0xff]
    %v571 = vld [vmem:[%s560 + $0x50] sm:$0xff]
    %v572 = vld [vmem:[%s560 + $0x58] sm:$0xff]
    %v573 = vld [vmem:[%s560 + $0x60] sm:$0xff]
    %v574 = vld [vmem:[%s560 + $0x68] sm:$0xff]
    %v575 = vld [vmem:[%s560 + $0x70] sm:$0xff]
    %v576 = vld [vmem:[%s560 + $0x78] sm:$0xff]
    %v577 = vld [vmem:[%s560 + $0x80] sm:$0xff]
    %v578 = vld [vmem:[%s560 + $0x88] sm:$0xff]
    %v579 = vld [vmem:[%s560 + $0x90] sm:$0xff]
    %v580 = vld [vmem:[%s560 + $0x98] sm:$0xff]
    %v581 = vld [vmem:[%s560 + $0xa0] sm:$0xff]
    %v582 = vld [vmem:[%s560 + $0xa8] sm:$0xff]
    %v583 = vld [vmem:[%s560 + $0xb0] sm:$0xff]
    %v584 = vld [vmem:[%s560 + $0xb8] sm:$0xff]
    %v585 = vld [vmem:[%s560 + $0xc0] sm:$0xff]
    %v586 = vld [vmem:[%s560 + $0xc8] sm:$0xff]
    %v587 = vld [vmem:[%s560 + $0xd0] sm:$0xff]
    %v588 = vld [vmem:[%s560 + $0xd8] sm:$0xff]
    %v589 = vld [vmem:[%s560 + $0xe0] sm:$0xff]
    %v590 = vld [vmem:[%s560 + $0xe8] sm:$0xff]
    %v591 = vld [vmem:[%s560 + $0xf0] sm:$0xff]
    %v592 = vld [vmem:[%s560 + $0xf8] sm:$0xff]
    %v625 = vunpack.c.l.b16 %v561
    %v626 = vunpack.c.h.b16 %v561
    %v627 = vunpack.c.l.b16 %v562
    %v628 = vunpack.c.h.b16 %v562
    %v629 = vunpack.c.l.b16 %v563
    %v630 = vunpack.c.h.b16 %v563
    %v631 = vunpack.c.l.b16 %v564
    %v632 = vunpack.c.h.b16 %v564
    %v633 = vunpack.c.l.b16 %v565
    %v634 = vunpack.c.h.b16 %v565
    %v635 = vunpack.c.l.b16 %v566
    %v636 = vunpack.c.h.b16 %v566
    %v637 = vunpack.c.l.b16 %v567
    %v638 = vunpack.c.h.b16 %v567
    %v639 = vunpack.c.l.b16 %v568
    %v640 = vunpack.c.h.b16 %v568
    %v641 = vunpack.c.l.b16 %v569
    %v642 = vunpack.c.h.b16 %v569
    %v643 = vunpack.c.l.b16 %v570
    %v644 = vunpack.c.h.b16 %v570
    %v645 = vunpack.c.l.b16 %v571
    %v646 = vunpack.c.h.b16 %v571
    %v647 = vunpack.c.l.b16 %v572
    %v648 = vunpack.c.h.b16 %v572
    %v649 = vunpack.c.l.b16 %v573
    %v650 = vunpack.c.h.b16 %v573
    %v651 = vunpack.c.l.b16 %v574
    %v652 = vunpack.c.h.b16 %v574
    %v653 = vunpack.c.l.b16 %v575
    %v654 = vunpack.c.h.b16 %v575
    %v655 = vunpack.c.l.b16 %v576
    %v656 = vunpack.c.h.b16 %v576
    %v657 = vunpack.c.l.b16 %v577
    %v658 = vunpack.c.h.b16 %v577
    %v659 = vunpack.c.l.b16 %v578
    %v660 = vunpack.c.h.b16 %v578
    %v661 = vunpack.c.l.b16 %v579
    %v662 = vunpack.c.h.b16 %v579
    %v663 = vunpack.c.l.b16 %v580
    %v664 = vunpack.c.h.b16 %v580
    %v665 = vunpack.c.l.b16 %v581
    %v666 = vunpack.c.h.b16 %v581
    %v667 = vunpack.c.l.b16 %v582
    %v668 = vunpack.c.h.b16 %v582
    %v669 = vunpack.c.l.b16 %v583
    %v670 = vunpack.c.h.b16 %v583
    %v671 = vunpack.c.l.b16 %v584
    %v672 = vunpack.c.h.b16 %v584
    %v673 = vunpack.c.l.b16 %v585
    %v674 = vunpack.c.h.b16 %v585
    %v675 = vunpack.c.l.b16 %v586
    %v676 = vunpack.c.h.b16 %v586
    %v677 = vunpack.c.l.b16 %v587
    %v678 = vunpack.c.h.b16 %v587
    %v679 = vunpack.c.l.b16 %v588
    %v680 = vunpack.c.h.b16 %v588
    %v681 = vunpack.c.l.b16 %v589
    %v682 = vunpack.c.h.b16 %v589
    %v683 = vunpack.c.l.b16 %v590
    %v684 = vunpack.c.h.b16 %v590
    %v685 = vunpack.c.l.b16 %v591
    %v686 = vunpack.c.h.b16 %v591
    %v687 = vunpack.c.l.b16 %v592
    %v688 = vunpack.c.h.b16 %v592
    %v689 = vpack.c.b16 %v627, %v625
    %v690 = vpack.c.b16 %v628, %v626
    %v691 = vpack.c.b16 %v631, %v629
    %v692 = vpack.c.b16 %v632, %v630
    %v693 = vpack.c.b16 %v635, %v633
    %v694 = vpack.c.b16 %v636, %v634
    %v695 = vpack.c.b16 %v639, %v637
    %v696 = vpack.c.b16 %v640, %v638
    %v697 = vpack.c.b16 %v643, %v641
    %v698 = vpack.c.b16 %v644, %v642
    %v699 = vpack.c.b16 %v647, %v645
    %v700 = vpack.c.b16 %v648, %v646
    %v701 = vpack.c.b16 %v651, %v649
    %v702 = vpack.c.b16 %v652, %v650
    %v703 = vpack.c.b16 %v655, %v653
    %v704 = vpack.c.b16 %v656, %v654
    %v705 = vpack.c.b16 %v659, %v657
    %v706 = vpack.c.b16 %v660, %v658
    %v707 = vpack.c.b16 %v663, %v661
    %v708 = vpack.c.b16 %v664, %v662
    %v709 = vpack.c.b16 %v667, %v665
    %v710 = vpack.c.b16 %v668, %v666
    %v711 = vpack.c.b16 %v671, %v669
    %v712 = vpack.c.b16 %v672, %v670
    %v713 = vpack.c.b16 %v675, %v673
    %v714 = vpack.c.b16 %v676, %v674
    %v715 = vpack.c.b16 %v679, %v677
    %v716 = vpack.c.b16 %v680, %v678
    %v717 = vpack.c.b16 %v683, %v681
    %v718 = vpack.c.b16 %v684, %v682
    %v719 = vpack.c.b16 %v687, %v685
    %v720 = vpack.c.b16 %v688, %v686
    %753 = vmatprep.subr.bf16.mxu0 %v690
    %754 = vmatpush1.bf16.msra.mxu0 %v689
    %755 = vmatprep.subr.bf16.mxu0 %v692
    %756 = vmatpush1.bf16.msra.mxu0 %v691
    %757 = vmatprep.subr.bf16.mxu0 %v694
    %758 = vmatpush1.bf16.msra.mxu0 %v693
    %759 = vmatprep.subr.bf16.mxu0 %v696
    %760 = vmatpush1.bf16.msra.mxu0 %v695
    %761 = vmatprep.subr.bf16.mxu0 %v698
    %762 = vmatpush1.bf16.msra.mxu0 %v697
    %763 = vmatprep.subr.bf16.mxu0 %v700
    %764 = vmatpush1.bf16.msra.mxu0 %v699
    %765 = vmatprep.subr.bf16.mxu0 %v702
    %766 = vmatpush1.bf16.msra.mxu0 %v701
    %767 = vmatprep.subr.bf16.mxu0 %v704
    %768 = vmatpush1.bf16.msra.mxu0 %v703
    %769 = vmatprep.subr.bf16.mxu0 %v706
    %770 = vmatpush1.bf16.msra.mxu0 %v705
    %771 = vmatprep.subr.bf16.mxu0 %v708
    %772 = vmatpush1.bf16.msra.mxu0 %v707
    %773 = vmatprep.subr.bf16.mxu0 %v710
    %774 = vmatpush1.bf16.msra.mxu0 %v709
    %775 = vmatprep.subr.bf16.mxu0 %v712
    %776 = vmatpush1.bf16.msra.mxu0 %v711
    %777 = vmatprep.subr.bf16.mxu0 %v714
    %778 = vmatpush1.bf16.msra.mxu0 %v713
    %779 = vmatprep.subr.bf16.mxu0 %v716
    %780 = vmatpush1.bf16.msra.mxu0 %v715
    %781 = vmatprep.subr.bf16.mxu0 %v718
    %782 = vmatpush1.bf16.msra.mxu0 %v717
    %783 = vmatprep.subr.bf16.mxu0 %v720
    %784 = vmatpush1.bf16.msra.mxu0 %v719
    %785 = vmatprep.mubr.bf16.mxu0 %v559
    %786 = vmatmul.mubr.bf16.gmra.mrb[0].mxu0 %v558
    %v787 = vpop.f32.mrb[0].mxu0
    %v788 = vadd.f32 0.0, %v787
    %v789 = vpop.f32.mrb[0].mxu0
    %v790 = vadd.f32 0.0, %v789
    %v791 = vpop.f32.mrb[0].mxu0
    %v792 = vadd.f32 0.0, %v791
    %v793 = vpop.f32.mrb[0].mxu0
    %v794 = vadd.f32 0.0, %v793
    %795 = vdwg.mxu0
    %v796 = vadd.f32 %v545, %v788
    %v797 = vadd.f32 %v547, %v790
    %v798 = vadd.f32 %v549, %v792
    %v799 = vadd.f32 %v551, %v794
    %s800 = scalar_lea.vmem [#allocation2], 96
    %v801 = vld [vmem:[%s800] sm:$0xff]
    %v802 = vld [vmem:[%s800 + $0x8] sm:$0xff]
    %v803 = vld [vmem:[%s800 + $0x10] sm:$0xff]
    %v804 = vld [vmem:[%s800 + $0x18] sm:$0xff]
    %v805 = vpack.c.bf16 %v803, %v801
    %v806 = vpack.c.bf16 %v804, %v802
    %s807 = scalar_lea.vmem [#allocation5], 768
    %v808 = vld [vmem:[%s807] sm:$0xff]
    %v809 = vld [vmem:[%s807 + $0x8] sm:$0xff]
    %v810 = vld [vmem:[%s807 + $0x10] sm:$0xff]
    %v811 = vld [vmem:[%s807 + $0x18] sm:$0xff]
    %v812 = vld [vmem:[%s807 + $0x20] sm:$0xff]
    %v813 = vld [vmem:[%s807 + $0x28] sm:$0xff]
    %v814 = vld [vmem:[%s807 + $0x30] sm:$0xff]
    %v815 = vld [vmem:[%s807 + $0x38] sm:$0xff]
    %v816 = vld [vmem:[%s807 + $0x40] sm:$0xff]
    %v817 = vld [vmem:[%s807 + $0x48] sm:$0xff]
    %v818 = vld [vmem:[%s807 + $0x50] sm:$0xff]
    %v819 = vld [vmem:[%s807 + $0x58] sm:$0xff]
    %v820 = vld [vmem:[%s807 + $0x60] sm:$0xff]
    %v821 = vld [vmem:[%s807 + $0x68] sm:$0xff]
    %v822 = vld [vmem:[%s807 + $0x70] sm:$0xff]
    %v823 = vld [vmem:[%s807 + $0x78] sm:$0xff]
    %v824 = vld [vmem:[%s807 + $0x80] sm:$0xff]
    %v825 = vld [vmem:[%s807 + $0x88] sm:$0xff]
    %v826 = vld [vmem:[%s807 + $0x90] sm:$0xff]
    %v827 = vld [vmem:[%s807 + $0x98] sm:$0xff]
    %v828 = vld [vmem:[%s807 + $0xa0] sm:$0xff]
    %v829 = vld [vmem:[%s807 + $0xa8] sm:$0xff]
    %v830 = vld [vmem:[%s807 + $0xb0] sm:$0xff]
    %v831 = vld [vmem:[%s807 + $0xb8] sm:$0xff]
    %v832 = vld [vmem:[%s807 + $0xc0] sm:$0xff]
    %v833 = vld [vmem:[%s807 + $0xc8] sm:$0xff]
    %v834 = vld [vmem:[%s807 + $0xd0] sm:$0xff]
    %v835 = vld [vmem:[%s807 + $0xd8] sm:$0xff]
    %v836 = vld [vmem:[%s807 + $0xe0] sm:$0xff]
    %v837 = vld [vmem:[%s807 + $0xe8] sm:$0xff]
    %v838 = vld [vmem:[%s807 + $0xf0] sm:$0xff]
    %v839 = vld [vmem:[%s807 + $0xf8] sm:$0xff]
    %v872 = vunpack.c.l.b16 %v808
    %v873 = vunpack.c.h.b16 %v808
    %v874 = vunpack.c.l.b16 %v809
    %v875 = vunpack.c.h.b16 %v809
    %v876 = vunpack.c.l.b16 %v810
    %v877 = vunpack.c.h.b16 %v810
    %v878 = vunpack.c.l.b16 %v811
    %v879 = vunpack.c.h.b16 %v811
    %v880 = vunpack.c.l.b16 %v812
    %v881 = vunpack.c.h.b16 %v812
    %v882 = vunpack.c.l.b16 %v813
    %v883 = vunpack.c.h.b16 %v813
    %v884 = vunpack.c.l.b16 %v814
    %v885 = vunpack.c.h.b16 %v814
    %v886 = vunpack.c.l.b16 %v815
    %v887 = vunpack.c.h.b16 %v815
    %v888 = vunpack.c.l.b16 %v816
    %v889 = vunpack.c.h.b16 %v816
    %v890 = vunpack.c.l.b16 %v817
    %v891 = vunpack.c.h.b16 %v817
    %v892 = vunpack.c.l.b16 %v818
    %v893 = vunpack.c.h.b16 %v818
    %v894 = vunpack.c.l.b16 %v819
    %v895 = vunpack.c.h.b16 %v819
    %v896 = vunpack.c.l.b16 %v820
    %v897 = vunpack.c.h.b16 %v820
    %v898 = vunpack.c.l.b16 %v821
    %v899 = vunpack.c.h.b16 %v821
    %v900 = vunpack.c.l.b16 %v822
    %v901 = vunpack.c.h.b16 %v822
    %v902 = vunpack.c.l.b16 %v823
    %v903 = vunpack.c.h.b16 %v823
    %v904 = vunpack.c.l.b16 %v824
    %v905 = vunpack.c.h.b16 %v824
    %v906 = vunpack.c.l.b16 %v825
    %v907 = vunpack.c.h.b16 %v825
    %v908 = vunpack.c.l.b16 %v826
    %v909 = vunpack.c.h.b16 %v826
    %v910 = vunpack.c.l.b16 %v827
    %v911 = vunpack.c.h.b16 %v827
    %v912 = vunpack.c.l.b16 %v828
    %v913 = vunpack.c.h.b16 %v828
    %v914 = vunpack.c.l.b16 %v829
    %v915 = vunpack.c.h.b16 %v829
    %v916 = vunpack.c.l.b16 %v830
    %v917 = vunpack.c.h.b16 %v830
    %v918 = vunpack.c.l.b16 %v831
    %v919 = vunpack.c.h.b16 %v831
    %v920 = vunpack.c.l.b16 %v832
    %v921 = vunpack.c.h.b16 %v832
    %v922 = vunpack.c.l.b16 %v833
    %v923 = vunpack.c.h.b16 %v833
    %v924 = vunpack.c.l.b16 %v834
    %v925 = vunpack.c.h.b16 %v834
    %v926 = vunpack.c.l.b16 %v835
    %v927 = vunpack.c.h.b16 %v835
    %v928 = vunpack.c.l.b16 %v836
    %v929 = vunpack.c.h.b16 %v836
    %v930 = vunpack.c.l.b16 %v837
    %v931 = vunpack.c.h.b16 %v837
    %v932 = vunpack.c.l.b16 %v838
    %v933 = vunpack.c.h.b16 %v838
    %v934 = vunpack.c.l.b16 %v839
    %v935 = vunpack.c.h.b16 %v839
    %v936 = vpack.c.b16 %v874, %v872
    %v937 = vpack.c.b16 %v875, %v873
    %v938 = vpack.c.b16 %v878, %v876
    %v939 = vpack.c.b16 %v879, %v877
    %v940 = vpack.c.b16 %v882, %v880
    %v941 = vpack.c.b16 %v883, %v881
    %v942 = vpack.c.b16 %v886, %v884
    %v943 = vpack.c.b16 %v887, %v885
    %v944 = vpack.c.b16 %v890, %v888
    %v945 = vpack.c.b16 %v891, %v889
    %v946 = vpack.c.b16 %v894, %v892
    %v947 = vpack.c.b16 %v895, %v893
    %v948 = vpack.c.b16 %v898, %v896
    %v949 = vpack.c.b16 %v899, %v897
    %v950 = vpack.c.b16 %v902, %v900
    %v951 = vpack.c.b16 %v903, %v901
    %v952 = vpack.c.b16 %v906, %v904
    %v953 = vpack.c.b16 %v907, %v905
    %v954 = vpack.c.b16 %v910, %v908
    %v955 = vpack.c.b16 %v911, %v909
    %v956 = vpack.c.b16 %v914, %v912
    %v957 = vpack.c.b16 %v915, %v913
    %v958 = vpack.c.b16 %v918, %v916
    %v959 = vpack.c.b16 %v919, %v917
    %v960 = vpack.c.b16 %v922, %v920
    %v961 = vpack.c.b16 %v923, %v921
    %v962 = vpack.c.b16 %v926, %v924
    %v963 = vpack.c.b16 %v927, %v925
    %v964 = vpack.c.b16 %v930, %v928
    %v965 = vpack.c.b16 %v931, %v929
    %v966 = vpack.c.b16 %v934, %v932
    %v967 = vpack.c.b16 %v935, %v933
    %1000 = vmatprep.subr.bf16.mxu0 %v937
    %1001 = vmatpush1.bf16.msra.mxu0 %v936
    %1002 = vmatprep.subr.bf16.mxu0 %v939
    %1003 = vmatpush1.bf16.msra.mxu0 %v938
    %1004 = vmatprep.subr.bf16.mxu0 %v941
    %1005 = vmatpush1.bf16.msra.mxu0 %v940
    %1006 = vmatprep.subr.bf16.mxu0 %v943
    %1007 = vmatpush1.bf16.msra.mxu0 %v942
    %1008 = vmatprep.subr.bf16.mxu0 %v945
    %1009 = vmatpush1.bf16.msra.mxu0 %v944
    %1010 = vmatprep.subr.bf16.mxu0 %v947
    %1011 = vmatpush1.bf16.msra.mxu0 %v946
    %1012 = vmatprep.subr.bf16.mxu0 %v949
    %1013 = vmatpush1.bf16.msra.mxu0 %v948
    %1014 = vmatprep.subr.bf16.mxu0 %v951
    %1015 = vmatpush1.bf16.msra.mxu0 %v950
    %1016 = vmatprep.subr.bf16.mxu0 %v953
    %1017 = vmatpush1.bf16.msra.mxu0 %v952
    %1018 = vmatprep.subr.bf16.mxu0 %v955
    %1019 = vmatpush1.bf16.msra.mxu0 %v954
    %1020 = vmatprep.subr.bf16.mxu0 %v957
    %1021 = vmatpush1.bf16.msra.mxu0 %v956
    %1022 = vmatprep.subr.bf16.mxu0 %v959
    %1023 = vmatpush1.bf16.msra.mxu0 %v958
    %1024 = vmatprep.subr.bf16.mxu0 %v961
    %1025 = vmatpush1.bf16.msra.mxu0 %v960
    %1026 = vmatprep.subr.bf16.mxu0 %v963
    %1027 = vmatpush1.bf16.msra.mxu0 %v962
    %1028 = vmatprep.subr.bf16.mxu0 %v965
    %1029 = vmatpush1.bf16.msra.mxu0 %v964
    %1030 = vmatprep.subr.bf16.mxu0 %v967
    %1031 = vmatpush1.bf16.msra.mxu0 %v966
    %1032 = vmatprep.mubr.bf16.mxu0 %v806
    %1033 = vmatmul.mubr.bf16.gmra.mrb[0].mxu0 %v805
    %v1034 = vpop.f32.mrb[0].mxu0
    %v1035 = vadd.f32 0.0, %v1034
    %v1036 = vpop.f32.mrb[0].mxu0
    %v1037 = vadd.f32 0.0, %v1036
    %v1038 = vpop.f32.mrb[0].mxu0
    %v1039 = vadd.f32 0.0, %v1038
    %v1040 = vpop.f32.mrb[0].mxu0
    %v1041 = vadd.f32 0.0, %v1040
    %1042 = vdwg.mxu0
    %v1043 = vadd.f32 %v796, %v1035
    %v1044 = vadd.f32 %v797, %v1037
    %v1045 = vadd.f32 %v798, %v1039
    %v1046 = vadd.f32 %v799, %v1041
    %s1047 = scalar_lea.vmem [#allocation2], 128
    %v1048 = vld [vmem:[%s1047] sm:$0xff]
    %v1049 = vld [vmem:[%s1047 + $0x8] sm:$0xff]
    %v1050 = vld [vmem:[%s1047 + $0x10] sm:$0xff]
    %v1051 = vld [vmem:[%s1047 + $0x18] sm:$0xff]
    %v1052 = vpack.c.bf16 %v1050, %v1048
    %v1053 = vpack.c.bf16 %v1051, %v1049
    %s1054 = scalar_lea.vmem [#allocation5], 1024
    %v1055 = vld [vmem:[%s1054] sm:$0xff]
    %v1056 = vld [vmem:[%s1054 + $0x8] sm:$0xff]
    %v1057 = vld [vmem:[%s1054 + $0x10] sm:$0xff]
    %v1058 = vld [vmem:[%s1054 + $0x18] sm:$0xff]
    %v1059 = vld [vmem:[%s1054 + $0x20] sm:$0xff]
    %v1060 = vld [vmem:[%s1054 + $0x28] sm:$0xff]
    %v1061 = vld [vmem:[%s1054 + $0x30] sm:$0xff]
    %v1062 = vld [vmem:[%s1054 + $0x38] sm:$0xff]
    %v1063 = vld [vmem:[%s1054 + $0x40] sm:$0xff]
    %v1064 = vld [vmem:[%s1054 + $0x48] sm:$0xff]
    %v1065 = vld [vmem:[%s1054 + $0x50] sm:$0xff]
    %v1066 = vld [vmem:[%s1054 + $0x58] sm:$0xff]
    %v1067 = vld [vmem:[%s1054 + $0x60] sm:$0xff]
    %v1068 = vld [vmem:[%s1054 + $0x68] sm:$0xff]
    %v1069 = vld [vmem:[%s1054 + $0x70] sm:$0xff]
    %v1070 = vld [vmem:[%s1054 + $0x78] sm:$0xff]
    %v1071 = vld [vmem:[%s1054 + $0x80] sm:$0xff]
    %v1072 = vld [vmem:[%s1054 + $0x88] sm:$0xff]
    %v1073 = vld [vmem:[%s1054 + $0x90] sm:$0xff]
    %v1074 = vld [vmem:[%s1054 + $0x98] sm:$0xff]
    %v1075 = vld [vmem:[%s1054 + $0xa0] sm:$0xff]
    %v1076 = vld [vmem:[%s1054 + $0xa8] sm:$0xff]
    %v1077 = vld [vmem:[%s1054 + $0xb0] sm:$0xff]
    %v1078 = vld [vmem:[%s1054 + $0xb8] sm:$0xff]
    %v1079 = vld [vmem:[%s1054 + $0xc0] sm:$0xff]
    %v1080 = vld [vmem:[%s1054 + $0xc8] sm:$0xff]
    %v1081 = vld [vmem:[%s1054 + $0xd0] sm:$0xff]
    %v1082 = vld [vmem:[%s1054 + $0xd8] sm:$0xff]
    %v1083 = vld [vmem:[%s1054 + $0xe0] sm:$0xff]
    %v1084 = vld [vmem:[%s1054 + $0xe8] sm:$0xff]
    %v1085 = vld [vmem:[%s1054 + $0xf0] sm:$0xff]
    %v1086 = vld [vmem:[%s1054 + $0xf8] sm:$0xff]
    %v1119 = vunpack.c.l.b16 %v1055
    %v1120 = vunpack.c.h.b16 %v1055
    %v1121 = vunpack.c.l.b16 %v1056
    %v1122 = vunpack.c.h.b16 %v1056
    %v1123 = vunpack.c.l.b16 %v1057
    %v1124 = vunpack.c.h.b16 %v1057
    %v1125 = vunpack.c.l.b16 %v1058
    %v1126 = vunpack.c.h.b16 %v1058
    %v1127 = vunpack.c.l.b16 %v1059
    %v1128 = vunpack.c.h.b16 %v1059
    %v1129 = vunpack.c.l.b16 %v1060
    %v1130 = vunpack.c.h.b16 %v1060
    %v1131 = vunpack.c.l.b16 %v1061
    %v1132 = vunpack.c.h.b16 %v1061
    %v1133 = vunpack.c.l.b16 %v1062
    %v1134 = vunpack.c.h.b16 %v1062
    %v1135 = vunpack.c.l.b16 %v1063
    %v1136 = vunpack.c.h.b16 %v1063
    %v1137 = vunpack.c.l.b16 %v1064
    %v1138 = vunpack.c.h.b16 %v1064
    %v1139 = vunpack.c.l.b16 %v1065
    %v1140 = vunpack.c.h.b16 %v1065
    %v1141 = vunpack.c.l.b16 %v1066
    %v1142 = vunpack.c.h.b16 %v1066
    %v1143 = vunpack.c.l.b16 %v1067
    %v1144 = vunpack.c.h.b16 %v1067
    %v1145 = vunpack.c.l.b16 %v1068
    %v1146 = vunpack.c.h.b16 %v1068
    %v1147 = vunpack.c.l.b16 %v1069
    %v1148 = vunpack.c.h.b16 %v1069
    %v1149 = vunpack.c.l.b16 %v1070
    %v1150 = vunpack.c.h.b16 %v1070
    %v1151 = vunpack.c.l.b16 %v1071
    %v1152 = vunpack.c.h.b16 %v1071
    %v1153 = vunpack.c.l.b16 %v1072
    %v1154 = vunpack.c.h.b16 %v1072
    %v1155 = vunpack.c.l.b16 %v1073
    %v1156 = vunpack.c.h.b16 %v1073
    %v1157 = vunpack.c.l.b16 %v1074
    %v1158 = vunpack.c.h.b16 %v1074
    %v1159 = vunpack.c.l.b16 %v1075
    %v1160 = vunpack.c.h.b16 %v1075
    %v1161 = vunpack.c.l.b16 %v1076
    %v1162 = vunpack.c.h.b16 %v1076
    %v1163 = vunpack.c.l.b16 %v1077
    %v1164 = vunpack.c.h.b16 %v1077
    %v1165 = vunpack.c.l.b16 %v1078
    %v1166 = vunpack.c.h.b16 %v1078
    %v1167 = vunpack.c.l.b16 %v1079
    %v1168 = vunpack.c.h.b16 %v1079
    %v1169 = vunpack.c.l.b16 %v1080
    %v1170 = vunpack.c.h.b16 %v1080
    %v1171 = vunpack.c.l.b16 %v1081
    %v1172 = vunpack.c.h.b16 %v1081
    %v1173 = vunpack.c.l.b16 %v1082
    %v1174 = vunpack.c.h.b16 %v1082
    %v1175 = vunpack.c.l.b16 %v1083
    %v1176 = vunpack.c.h.b16 %v1083
    %v1177 = vunpack.c.l.b16 %v1084
    %v1178 = vunpack.c.h.b16 %v1084
    %v1179 = vunpack.c.l.b16 %v1085
    %v1180 = vunpack.c.h.b16 %v1085
    %v1181 = vunpack.c.l.b16 %v1086
    %v1182 = vunpack.c.h.b16 %v1086
    %v1183 = vpack.c.b16 %v1121, %v1119
    %v1184 = vpack.c.b16 %v1122, %v1120
    %v1185 = vpack.c.b16 %v1125, %v1123
    %v1186 = vpack.c.b16 %v1126, %v1124
    %v1187 = vpack.c.b16 %v1129, %v1127
    %v1188 = vpack.c.b16 %v1130, %v1128
    %v1189 = vpack.c.b16 %v1133, %v1131
    %v1190 = vpack.c.b16 %v1134, %v1132
    %v1191 = vpack.c.b16 %v1137, %v1135
    %v1192 = vpack.c.b16 %v1138, %v1136
    %v1193 = vpack.c.b16 %v1141, %v1139
    %v1194 = vpack.c.b16 %v1142, %v1140
    %v1195 = vpack.c.b16 %v1145, %v1143
    %v1196 = vpack.c.b16 %v1146, %v1144
    %v1197 = vpack.c.b16 %v1149, %v1147
    %v1198 = vpack.c.b16 %v1150, %v1148
    %v1199 = vpack.c.b16 %v1153, %v1151
    %v1200 = vpack.c.b16 %v1154, %v1152
    %v1201 = vpack.c.b16 %v1157, %v1155
    %v1202 = vpack.c.b16 %v1158, %v1156
    %v1203 = vpack.c.b16 %v1161, %v1159
    %v1204 = vpack.c.b16 %v1162, %v1160
    %v1205 = vpack.c.b16 %v1165, %v1163
    %v1206 = vpack.c.b16 %v1166, %v1164
    %v1207 = vpack.c.b16 %v1169, %v1167
    %v1208 = vpack.c.b16 %v1170, %v1168
    %v1209 = vpack.c.b16 %v1173, %v1171
    %v1210 = vpack.c.b16 %v1174, %v1172
    %v1211 = vpack.c.b16 %v1177, %v1175
    %v1212 = vpack.c.b16 %v1178, %v1176
    %v1213 = vpack.c.b16 %v1181, %v1179
    %v1214 = vpack.c.b16 %v1182, %v1180
    %1247 = vmatprep.subr.bf16.mxu0 %v1184
    %1248 = vmatpush1.bf16.msra.mxu0 %v1183
    %1249 = vmatprep.subr.bf16.mxu0 %v1186
    %1250 = vmatpush1.bf16.msra.mxu0 %v1185
    %1251 = vmatprep.subr.bf16.mxu0 %v1188
    %1252 = vmatpush1.bf16.msra.mxu0 %v1187
    %1253 = vmatprep.subr.bf16.mxu0 %v1190
    %1254 = vmatpush1.bf16.msra.mxu0 %v1189
    %1255 = vmatprep.subr.bf16.mxu0 %v1192
    %1256 = vmatpush1.bf16.msra.mxu0 %v1191
    %1257 = vmatprep.subr.bf16.mxu0 %v1194
    %1258 = vmatpush1.bf16.msra.mxu0 %v1193
    %1259 = vmatprep.subr.bf16.mxu0 %v1196
    %1260 = vmatpush1.bf16.msra.mxu0 %v1195
    %1261 = vmatprep.subr.bf16.mxu0 %v1198
    %1262 = vmatpush1.bf16.msra.mxu0 %v1197
    %1263 = vmatprep.subr.bf16.mxu0 %v1200
    %1264 = vmatpush1.bf16.msra.mxu0 %v1199
    %1265 = vmatprep.subr.bf16.mxu0 %v1202
    %1266 = vmatpush1.bf16.msra.mxu0 %v1201
    %1267 = vmatprep.subr.bf16.mxu0 %v1204
    %1268 = vmatpush1.bf16.msra.mxu0 %v1203
    %1269 = vmatprep.subr.bf16.mxu0 %v1206
    %1270 = vmatpush1.bf16.msra.mxu0 %v1205
    %1271 = vmatprep.subr.bf16.mxu0 %v1208
    %1272 = vmatpush1.bf16.msra.mxu0 %v1207
    %1273 = vmatprep.subr.bf16.mxu0 %v1210
    %1274 = vmatpush1.bf16.msra.mxu0 %v1209
    %1275 = vmatprep.subr.bf16.mxu0 %v1212
    %1276 = vmatpush1.bf16.msra.mxu0 %v1211
    %1277 = vmatprep.subr.bf16.mxu0 %v1214
    %1278 = vmatpush1.bf16.msra.mxu0 %v1213
    %1279 = vmatprep.mubr.bf16.mxu0 %v1053
    %1280 = vmatmul.mubr.bf16.gmra.mrb[0].mxu0 %v1052
    %v1281 = vpop.f32.mrb[0].mxu0
    %v1282 = vadd.f32 0.0, %v1281
    %v1283 = vpop.f32.mrb[0].mxu0
    %v1284 = vadd.f32 0.0, %v1283
    %v1285 = vpop.f32.mrb[0].mxu0
    %v1286 = vadd.f32 0.0, %v1285
    %v1287 = vpop.f32.mrb[0].mxu0
    %v1288 = vadd.f32 0.0, %v1287
    %1289 = vdwg.mxu0
    %v1290 = vadd.f32 %v1043, %v1282
    %v1291 = vadd.f32 %v1044, %v1284
    %v1292 = vadd.f32 %v1045, %v1286
    %v1293 = vadd.f32 %v1046, %v1288
    %s1294 = scalar_lea.vmem [#allocation2], 160
    %v1295 = vld [vmem:[%s1294] sm:$0xff]
    %v1296 = vld [vmem:[%s1294 + $0x8] sm:$0xff]
    %v1297 = vld [vmem:[%s1294 + $0x10] sm:$0xff]
    %v1298 = vld [vmem:[%s1294 + $0x18] sm:$0xff]
    %v1299 = vpack.c.bf16 %v1297, %v1295
    %v1300 = vpack.c.bf16 %v1298, %v1296
    %s1301 = scalar_lea.vmem [#allocation5], 1280
    %v1302 = vld [vmem:[%s1301] sm:$0xff]
    %v1303 = vld [vmem:[%s1301 + $0x8] sm:$0xff]
    %v1304 = vld [vmem:[%s1301 + $0x10] sm:$0xff]
    %v1305 = vld [vmem:[%s1301 + $0x18] sm:$0xff]
    %v1306 = vld [vmem:[%s1301 + $0x20] sm:$0xff]
    %v1307 = vld [vmem:[%s1301 + $0x28] sm:$0xff]
    %v1308 = vld [vmem:[%s1301 + $0x30] sm:$0xff]
    %v1309 = vld [vmem:[%s1301 + $0x38] sm:$0xff]
    %v1310 = vld [vmem:[%s1301 + $0x40] sm:$0xff]
    %v1311 = vld [vmem:[%s1301 + $0x48] sm:$0xff]
    %v1312 = vld [vmem:[%s1301 + $0x50] sm:$0xff]
    %v1313 = vld [vmem:[%s1301 + $0x58] sm:$0xff]
    %v1314 = vld [vmem:[%s1301 + $0x60] sm:$0xff]
    %v1315 = vld [vmem:[%s1301 + $0x68] sm:$0xff]
    %v1316 = vld [vmem:[%s1301 + $0x70] sm:$0xff]
    %v1317 = vld [vmem:[%s1301 + $0x78] sm:$0xff]
    %v1318 = vld [vmem:[%s1301 + $0x80] sm:$0xff]
    %v1319 = vld [vmem:[%s1301 + $0x88] sm:$0xff]
    %v1320 = vld [vmem:[%s1301 + $0x90] sm:$0xff]
    %v1321 = vld [vmem:[%s1301 + $0x98] sm:$0xff]
    %v1322 = vld [vmem:[%s1301 + $0xa0] sm:$0xff]
    %v1323 = vld [vmem:[%s1301 + $0xa8] sm:$0xff]
    %v1324 = vld [vmem:[%s1301 + $0xb0] sm:$0xff]
    %v1325 = vld [vmem:[%s1301 + $0xb8] sm:$0xff]
    %v1326 = vld [vmem:[%s1301 + $0xc0] sm:$0xff]
    %v1327 = vld [vmem:[%s1301 + $0xc8] sm:$0xff]
    %v1328 = vld [vmem:[%s1301 + $0xd0] sm:$0xff]
    %v1329 = vld [vmem:[%s1301 + $0xd8] sm:$0xff]
    %v1330 = vld [vmem:[%s1301 + $0xe0] sm:$0xff]
    %v1331 = vld [vmem:[%s1301 + $0xe8] sm:$0xff]
    %v1332 = vld [vmem:[%s1301 + $0xf0] sm:$0xff]
    %v1333 = vld [vmem:[%s1301 + $0xf8] sm:$0xff]
    %v1366 = vunpack.c.l.b16 %v1302
    %v1367 = vunpack.c.h.b16 %v1302
    %v1368 = vunpack.c.l.b16 %v1303
    %v1369 = vunpack.c.h.b16 %v1303
    %v1370 = vunpack.c.l.b16 %v1304
    %v1371 = vunpack.c.h.b16 %v1304
    %v1372 = vunpack.c.l.b16 %v1305
    %v1373 = vunpack.c.h.b16 %v1305
    %v1374 = vunpack.c.l.b16 %v1306
    %v1375 = vunpack.c.h.b16 %v1306
    %v1376 = vunpack.c.l.b16 %v1307
    %v1377 = vunpack.c.h.b16 %v1307
    %v1378 = vunpack.c.l.b16 %v1308
    %v1379 = vunpack.c.h.b16 %v1308
    %v1380 = vunpack.c.l.b16 %v1309
    %v1381 = vunpack.c.h.b16 %v1309
    %v1382 = vunpack.c.l.b16 %v1310
    %v1383 = vunpack.c.h.b16 %v1310
    %v1384 = vunpack.c.l.b16 %v1311
    %v1385 = vunpack.c.h.b16 %v1311
    %v1386 = vunpack.c.l.b16 %v1312
    %v1387 = vunpack.c.h.b16 %v1312
    %v1388 = vunpack.c.l.b16 %v1313
    %v1389 = vunpack.c.h.b16 %v1313
    %v1390 = vunpack.c.l.b16 %v1314
    %v1391 = vunpack.c.h.b16 %v1314
    %v1392 = vunpack.c.l.b16 %v1315
    %v1393 = vunpack.c.h.b16 %v1315
    %v1394 = vunpack.c.l.b16 %v1316
    %v1395 = vunpack.c.h.b16 %v1316
    %v1396 = vunpack.c.l.b16 %v1317
    %v1397 = vunpack.c.h.b16 %v1317
    %v1398 = vunpack.c.l.b16 %v1318
    %v1399 = vunpack.c.h.b16 %v1318
    %v1400 = vunpack.c.l.b16 %v1319
    %v1401 = vunpack.c.h.b16 %v1319
    %v1402 = vunpack.c.l.b16 %v1320
    %v1403 = vunpack.c.h.b16 %v1320
    %v1404 = vunpack.c.l.b16 %v1321
    %v1405 = vunpack.c.h.b16 %v1321
    %v1406 = vunpack.c.l.b16 %v1322
    %v1407 = vunpack.c.h.b16 %v1322
    %v1408 = vunpack.c.l.b16 %v1323
    %v1409 = vunpack.c.h.b16 %v1323
    %v1410 = vunpack.c.l.b16 %v1324
    %v1411 = vunpack.c.h.b16 %v1324
    %v1412 = vunpack.c.l.b16 %v1325
    %v1413 = vunpack.c.h.b16 %v1325
    %v1414 = vunpack.c.l.b16 %v1326
    %v1415 = vunpack.c.h.b16 %v1326
    %v1416 = vunpack.c.l.b16 %v1327
    %v1417 = vunpack.c.h.b16 %v1327
    %v1418 = vunpack.c.l.b16 %v1328
    %v1419 = vunpack.c.h.b16 %v1328
    %v1420 = vunpack.c.l.b16 %v1329
    %v1421 = vunpack.c.h.b16 %v1329
    %v1422 = vunpack.c.l.b16 %v1330
    %v1423 = vunpack.c.h.b16 %v1330
    %v1424 = vunpack.c.l.b16 %v1331
    %v1425 = vunpack.c.h.b16 %v1331
    %v1426 = vunpack.c.l.b16 %v1332
    %v1427 = vunpack.c.h.b16 %v1332
    %v1428 = vunpack.c.l.b16 %v1333
    %v1429 = vunpack.c.h.b16 %v1333
    %v1430 = vpack.c.b16 %v1368, %v1366
    %v1431 = vpack.c.b16 %v1369, %v1367
    %v1432 = vpack.c.b16 %v1372, %v1370
    %v1433 = vpack.c.b16 %v1373, %v1371
    %v1434 = vpack.c.b16 %v1376, %v1374
    %v1435 = vpack.c.b16 %v1377, %v1375
    %v1436 = vpack.c.b16 %v1380, %v1378
    %v1437 = vpack.c.b16 %v1381, %v1379
    %v1438 = vpack.c.b16 %v1384, %v1382
    %v1439 = vpack.c.b16 %v1385, %v1383
    %v1440 = vpack.c.b16 %v1388, %v1386
    %v1441 = vpack.c.b16 %v1389, %v1387
    %v1442 = vpack.c.b16 %v1392, %v1390
    %v1443 = vpack.c.b16 %v1393, %v1391
    %v1444 = vpack.c.b16 %v1396, %v1394
    %v1445 = vpack.c.b16 %v1397, %v1395
    %v1446 = vpack.c.b16 %v1400, %v1398
    %v1447 = vpack.c.b16 %v1401, %v1399
    %v1448 = vpack.c.b16 %v1404, %v1402
    %v1449 = vpack.c.b16 %v1405, %v1403
    %v1450 = vpack.c.b16 %v1408, %v1406
    %v1451 = vpack.c.b16 %v1409, %v1407
    %v1452 = vpack.c.b16 %v1412, %v1410
    %v1453 = vpack.c.b16 %v1413, %v1411
    %v1454 = vpack.c.b16 %v1416, %v1414
    %v1455 = vpack.c.b16 %v1417, %v1415
    %v1456 = vpack.c.b16 %v1420, %v1418
    %v1457 = vpack.c.b16 %v1421, %v1419
    %v1458 = vpack.c.b16 %v1424, %v1422
    %v1459 = vpack.c.b16 %v1425, %v1423
    %v1460 = vpack.c.b16 %v1428, %v1426
    %v1461 = vpack.c.b16 %v1429, %v1427
    %1494 = vmatprep.subr.bf16.mxu0 %v1431
    %1495 = vmatpush1.bf16.msra.mxu0 %v1430
    %1496 = vmatprep.subr.bf16.mxu0 %v1433
    %1497 = vmatpush1.bf16.msra.mxu0 %v1432
    %1498 = vmatprep.subr.bf16.mxu0 %v1435
    %1499 = vmatpush1.bf16.msra.mxu0 %v1434
    %1500 = vmatprep.subr.bf16.mxu0 %v1437
    %1501 = vmatpush1.bf16.msra.mxu0 %v1436
    %1502 = vmatprep.subr.bf16.mxu0 %v1439
    %1503 = vmatpush1.bf16.msra.mxu0 %v1438
    %1504 = vmatprep.subr.bf16.mxu0 %v1441
    %1505 = vmatpush1.bf16.msra.mxu0 %v1440
    %1506 = vmatprep.subr.bf16.mxu0 %v1443
    %1507 = vmatpush1.bf16.msra.mxu0 %v1442
    %1508 = vmatprep.subr.bf16.mxu0 %v1445
    %1509 = vmatpush1.bf16.msra.mxu0 %v1444
    %1510 = vmatprep.subr.bf16.mxu0 %v1447
    %1511 = vmatpush1.bf16.msra.mxu0 %v1446
    %1512 = vmatprep.subr.bf16.mxu0 %v1449
    %1513 = vmatpush1.bf16.msra.mxu0 %v1448
    %1514 = vmatprep.subr.bf16.mxu0 %v1451
    %1515 = vmatpush1.bf16.msra.mxu0 %v1450
    %1516 = vmatprep.subr.bf16.mxu0 %v1453
    %1517 = vmatpush1.bf16.msra.mxu0 %v1452
    %1518 = vmatprep.subr.bf16.mxu0 %v1455
    %1519 = vmatpush1.bf16.msra.mxu0 %v1454
    %1520 = vmatprep.subr.bf16.mxu0 %v1457
    %1521 = vmatpush1.bf16.msra.mxu0 %v1456
    %1522 = vmatprep.subr.bf16.mxu0 %v1459
    %1523 = vmatpush1.bf16.msra.mxu0 %v1458
    %1524 = vmatprep.subr.bf16.mxu0 %v1461
    %1525 = vmatpush1.bf16.msra.mxu0 %v1460
    %1526 = vmatprep.mubr.bf16.mxu0 %v1300
    %1527 = vmatmul.mubr.bf16.gmra.mrb[0].mxu0 %v1299
    %v1528 = vpop.f32.mrb[0].mxu0
    %v1529 = vadd.f32 0.0, %v1528
    %v1530 = vpop.f32.mrb[0].mxu0
    %v1531 = vadd.f32 0.0, %v1530
    %v1532 = vpop.f32.mrb[0].mxu0
    %v1533 = vadd.f32 0.0, %v1532
    %v1534 = vpop.f32.mrb[0].mxu0
    %v1535 = vadd.f32 0.0, %v1534
    %1536 = vdwg.mxu0
    %v1537 = vadd.f32 %v1290, %v1529
    %v1538 = vadd.f32 %v1291, %v1531
    %v1539 = vadd.f32 %v1292, %v1533
    %v1540 = vadd.f32 %v1293, %v1535
    %s1541 = scalar_lea.vmem [#allocation2], 192
    %v1542 = vld [vmem:[%s1541] sm:$0xff]
    %v1543 = vld [vmem:[%s1541 + $0x8] sm:$0xff]
    %v1544 = vld [vmem:[%s1541 + $0x10] sm:$0xff]
    %v1545 = vld [vmem:[%s1541 + $0x18] sm:$0xff]
    %v1546 = vpack.c.bf16 %v1544, %v1542
    %v1547 = vpack.c.bf16 %v1545, %v1543
    %s1548 = scalar_lea.vmem [#allocation5], 1536
    %v1549 = vld [vmem:[%s1548] sm:$0xff]
    %v1550 = vld [vmem:[%s1548 + $0x8] sm:$0xff]
    %v1551 = vld [vmem:[%s1548 + $0x10] sm:$0xff]
    %v1552 = vld [vmem:[%s1548 + $0x18] sm:$0xff]
    %v1553 = vld [vmem:[%s1548 + $0x20] sm:$0xff]
    %v1554 = vld [vmem:[%s1548 + $0x28] sm:$0xff]
    %v1555 = vld [vmem:[%s1548 + $0x30] sm:$0xff]
    %v1556 = vld [vmem:[%s1548 + $0x38] sm:$0xff]
    %v1557 = vld [vmem:[%s1548 + $0x40] sm:$0xff]
    %v1558 = vld [vmem:[%s1548 + $0x48] sm:$0xff]
    %v1559 = vld [vmem:[%s1548 + $0x50] sm:$0xff]
    %v1560 = vld [vmem:[%s1548 + $0x58] sm:$0xff]
    %v1561 = vld [vmem:[%s1548 + $0x60] sm:$0xff]
    %v1562 = vld [vmem:[%s1548 + $0x68] sm:$0xff]
    %v1563 = vld [vmem:[%s1548 + $0x70] sm:$0xff]
    %v1564 = vld [vmem:[%s1548 + $0x78] sm:$0xff]
    %v1565 = vld [vmem:[%s1548 + $0x80] sm:$0xff]
    %v1566 = vld [vmem:[%s1548 + $0x88] sm:$0xff]
    %v1567 = vld [vmem:[%s1548 + $0x90] sm:$0xff]
    %v1568 = vld [vmem:[%s1548 + $0x98] sm:$0xff]
    %v1569 = vld [vmem:[%s1548 + $0xa0] sm:$0xff]
    %v1570 = vld [vmem:[%s1548 + $0xa8] sm:$0xff]
    %v1571 = vld [vmem:[%s1548 + $0xb0] sm:$0xff]
    %v1572 = vld [vmem:[%s1548 + $0xb8] sm:$0xff]
    %v1573 = vld [vmem:[%s1548 + $0xc0] sm:$0xff]
    %v1574 = vld [vmem:[%s1548 + $0xc8] sm:$0xff]
    %v1575 = vld [vmem:[%s1548 + $0xd0] sm:$0xff]
    %v1576 = vld [vmem:[%s1548 + $0xd8] sm:$0xff]
    %v1577 = vld [vmem:[%s1548 + $0xe0] sm:$0xff]
    %v1578 = vld [vmem:[%s1548 + $0xe8] sm:$0xff]
    %v1579 = vld [vmem:[%s1548 + $0xf0] sm:$0xff]
    %v1580 = vld [vmem:[%s1548 + $0xf8] sm:$0xff]
    %v1613 = vunpack.c.l.b16 %v1549
    %v1614 = vunpack.c.h.b16 %v1549
    %v1615 = vunpack.c.l.b16 %v1550
    %v1616 = vunpack.c.h.b16 %v1550
    %v1617 = vunpack.c.l.b16 %v1551
    %v1618 = vunpack.c.h.b16 %v1551
    %v1619 = vunpack.c.l.b16 %v1552
    %v1620 = vunpack.c.h.b16 %v1552
    %v1621 = vunpack.c.l.b16 %v1553
    %v1622 = vunpack.c.h.b16 %v1553
    %v1623 = vunpack.c.l.b16 %v1554
    %v1624 = vunpack.c.h.b16 %v1554
    %v1625 = vunpack.c.l.b16 %v1555
    %v1626 = vunpack.c.h.b16 %v1555
    %v1627 = vunpack.c.l.b16 %v1556
    %v1628 = vunpack.c.h.b16 %v1556
    %v1629 = vunpack.c.l.b16 %v1557
    %v1630 = vunpack.c.h.b16 %v1557
    %v1631 = vunpack.c.l.b16 %v1558
    %v1632 = vunpack.c.h.b16 %v1558
    %v1633 = vunpack.c.l.b16 %v1559
    %v1634 = vunpack.c.h.b16 %v1559
    %v1635 = vunpack.c.l.b16 %v1560
    %v1636 = vunpack.c.h.b16 %v1560
    %v1637 = vunpack.c.l.b16 %v1561
    %v1638 = vunpack.c.h.b16 %v1561
    %v1639 = vunpack.c.l.b16 %v1562
    %v1640 = vunpack.c.h.b16 %v1562
    %v1641 = vunpack.c.l.b16 %v1563
    %v1642 = vunpack.c.h.b16 %v1563
    %v1643 = vunpack.c.l.b16 %v1564
    %v1644 = vunpack.c.h.b16 %v1564
    %v1645 = vunpack.c.l.b16 %v1565
    %v1646 = vunpack.c.h.b16 %v1565
    %v1647 = vunpack.c.l.b16 %v1566
    %v1648 = vunpack.c.h.b16 %v1566
    %v1649 = vunpack.c.l.b16 %v1567
    %v1650 = vunpack.c.h.b16 %v1567
    %v1651 = vunpack.c.l.b16 %v1568
    %v1652 = vunpack.c.h.b16 %v1568
    %v1653 = vunpack.c.l.b16 %v1569
    %v1654 = vunpack.c.h.b16 %v1569
    %v1655 = vunpack.c.l.b16 %v1570
    %v1656 = vunpack.c.h.b16 %v1570
    %v1657 = vunpack.c.l.b16 %v1571
    %v1658 = vunpack.c.h.b16 %v1571
    %v1659 = vunpack.c.l.b16 %v1572
    %v1660 = vunpack.c.h.b16 %v1572
    %v1661 = vunpack.c.l.b16 %v1573
    %v1662 = vunpack.c.h.b16 %v1573
    %v1663 = vunpack.c.l.b16 %v1574
    %v1664 = vunpack.c.h.b16 %v1574
    %v1665 = vunpack.c.l.b16 %v1575
    %v1666 = vunpack.c.h.b16 %v1575
    %v1667 = vunpack.c.l.b16 %v1576
    %v1668 = vunpack.c.h.b16 %v1576
    %v1669 = vunpack.c.l.b16 %v1577
    %v1670 = vunpack.c.h.b16 %v1577
    %v1671 = vunpack.c.l.b16 %v1578
    %v1672 = vunpack.c.h.b16 %v1578
    %v1673 = vunpack.c.l.b16 %v1579
    %v1674 = vunpack.c.h.b16 %v1579
    %v1675 = vunpack.c.l.b16 %v1580
    %v1676 = vunpack.c.h.b16 %v1580
    %v1677 = vpack.c.b16 %v1615, %v1613
    %v1678 = vpack.c.b16 %v1616, %v1614
    %v1679 = vpack.c.b16 %v1619, %v1617
    %v1680 = vpack.c.b16 %v1620, %v1618
    %v1681 = vpack.c.b16 %v1623, %v1621
    %v1682 = vpack.c.b16 %v1624, %v1622
    %v1683 = vpack.c.b16 %v1627, %v1625
    %v1684 = vpack.c.b16 %v1628, %v1626
    %v1685 = vpack.c.b16 %v1631, %v1629
    %v1686 = vpack.c.b16 %v1632, %v1630
    %v1687 = vpack.c.b16 %v1635, %v1633
    %v1688 = vpack.c.b16 %v1636, %v1634
    %v1689 = vpack.c.b16 %v1639, %v1637
    %v1690 = vpack.c.b16 %v1640, %v1638
    %v1691 = vpack.c.b16 %v1643, %v1641
    %v1692 = vpack.c.b16 %v1644, %v1642
    %v1693 = vpack.c.b16 %v1647, %v1645
    %v1694 = vpack.c.b16 %v1648, %v1646
    %v1695 = vpack.c.b16 %v1651, %v1649
    %v1696 = vpack.c.b16 %v1652, %v1650
    %v1697 = vpack.c.b16 %v1655, %v1653
    %v1698 = vpack.c.b16 %v1656, %v1654
    %v1699 = vpack.c.b16 %v1659, %v1657
    %v1700 = vpack.c.b16 %v1660, %v1658
    %v1701 = vpack.c.b16 %v1663, %v1661
    %v1702 = vpack.c.b16 %v1664, %v1662
    %v1703 = vpack.c.b16 %v1667, %v1665
    %v1704 = vpack.c.b16 %v1668, %v1666
    %v1705 = vpack.c.b16 %v1671, %v1669
    %v1706 = vpack.c.b16 %v1672, %v1670
    %v1707 = vpack.c.b16 %v1675, %v1673
    %v1708 = vpack.c.b16 %v1676, %v1674
    %1741 = vmatprep.subr.bf16.mxu0 %v1678
    %1742 = vmatpush1.bf16.msra.mxu0 %v1677
    %1743 = vmatprep.subr.bf16.mxu0 %v1680
    %1744 = vmatpush1.bf16.msra.mxu0 %v1679
    %1745 = vmatprep.subr.bf16.mxu0 %v1682
    %1746 = vmatpush1.bf16.msra.mxu0 %v1681
    %1747 = vmatprep.subr.bf16.mxu0 %v1684
    %1748 = vmatpush1.bf16.msra.mxu0 %v1683
    %1749 = vmatprep.subr.bf16.mxu0 %v1686
    %1750 = vmatpush1.bf16.msra.mxu0 %v1685
    %1751 = vmatprep.subr.bf16.mxu0 %v1688
    %1752 = vmatpush1.bf16.msra.mxu0 %v1687
    %1753 = vmatprep.subr.bf16.mxu0 %v1690
    %1754 = vmatpush1.bf16.msra.mxu0 %v1689
    %1755 = vmatprep.subr.bf16.mxu0 %v1692
    %1756 = vmatpush1.bf16.msra.mxu0 %v1691
    %1757 = vmatprep.subr.bf16.mxu0 %v1694
    %1758 = vmatpush1.bf16.msra.mxu0 %v1693
    %1759 = vmatprep.subr.bf16.mxu0 %v1696
    %1760 = vmatpush1.bf16.msra.mxu0 %v1695
    %1761 = vmatprep.subr.bf16.mxu0 %v1698
    %1762 = vmatpush1.bf16.msra.mxu0 %v1697
    %1763 = vmatprep.subr.bf16.mxu0 %v1700
    %1764 = vmatpush1.bf16.msra.mxu0 %v1699
    %1765 = vmatprep.subr.bf16.mxu0 %v1702
    %1766 = vmatpush1.bf16.msra.mxu0 %v1701
    %1767 = vmatprep.subr.bf16.mxu0 %v1704
    %1768 = vmatpush1.bf16.msra.mxu0 %v1703
    %1769 = vmatprep.subr.bf16.mxu0 %v1706
    %1770 = vmatpush1.bf16.msra.mxu0 %v1705
    %1771 = vmatprep.subr.bf16.mxu0 %v1708
    %1772 = vmatpush1.bf16.msra.mxu0 %v1707
    %1773 = vmatprep.mubr.bf16.mxu0 %v1547
    %1774 = vmatmul.mubr.bf16.gmra.mrb[0].mxu0 %v1546
    %v1775 = vpop.f32.mrb[0].mxu0
    %v1776 = vadd.f32 0.0, %v1775
    %v1777 = vpop.f32.mrb[0].mxu0
    %v1778 = vadd.f32 0.0, %v1777
    %v1779 = vpop.f32.mrb[0].mxu0
    %v1780 = vadd.f32 0.0, %v1779
    %v1781 = vpop.f32.mrb[0].mxu0
    %v1782 = vadd.f32 0.0, %v1781
    %1783 = vdwg.mxu0
    %v1784 = vadd.f32 %v1537, %v1776
    %v1785 = vadd.f32 %v1538, %v1778
    %v1786 = vadd.f32 %v1539, %v1780
    %v1787 = vadd.f32 %v1540, %v1782
    %s1788 = scalar_lea.vmem [#allocation2], 224
    %v1789 = vld [vmem:[%s1788] sm:$0xff]
    %v1790 = vld [vmem:[%s1788 + $0x8] sm:$0xff]
    %v1791 = vld [vmem:[%s1788 + $0x10] sm:$0xff]
    %v1792 = vld [vmem:[%s1788 + $0x18] sm:$0xff]
    %v1793 = vpack.c.bf16 %v1791, %v1789
    %v1794 = vpack.c.bf16 %v1792, %v1790
    %s1795 = scalar_lea.vmem [#allocation5], 1792
    %v1796 = vld [vmem:[%s1795] sm:$0xff]
    %v1797 = vld [vmem:[%s1795 + $0x8] sm:$0xff]
    %v1798 = vld [vmem:[%s1795 + $0x10] sm:$0xff]
    %v1799 = vld [vmem:[%s1795 + $0x18] sm:$0xff]
    %v1800 = vld [vmem:[%s1795 + $0x20] sm:$0xff]
    %v1801 = vld [vmem:[%s1795 + $0x28] sm:$0xff]
    %v1802 = vld [vmem:[%s1795 + $0x30] sm:$0xff]
    %v1803 = vld [vmem:[%s1795 + $0x38] sm:$0xff]
    %v1804 = vld [vmem:[%s1795 + $0x40] sm:$0xff]
    %v1805 = vld [vmem:[%s1795 + $0x48] sm:$0xff]
    %v1806 = vld [vmem:[%s1795 + $0x50] sm:$0xff]
    %v1807 = vld [vmem:[%s1795 + $0x58] sm:$0xff]
    %v1808 = vld [vmem:[%s1795 + $0x60] sm:$0xff]
    %v1809 = vld [vmem:[%s1795 + $0x68] sm:$0xff]
    %v1810 = vld [vmem:[%s1795 + $0x70] sm:$0xff]
    %v1811 = vld [vmem:[%s1795 + $0x78] sm:$0xff]
    %v1812 = vld [vmem:[%s1795 + $0x80] sm:$0xff]
    %v1813 = vld [vmem:[%s1795 + $0x88] sm:$0xff]
    %v1814 = vld [vmem:[%s1795 + $0x90] sm:$0xff]
    %v1815 = vld [vmem:[%s1795 + $0x98] sm:$0xff]
    %v1816 = vld [vmem:[%s1795 + $0xa0] sm:$0xff]
    %v1817 = vld [vmem:[%s1795 + $0xa8] sm:$0xff]
    %v1818 = vld [vmem:[%s1795 + $0xb0] sm:$0xff]
    %v1819 = vld [vmem:[%s1795 + $0xb8] sm:$0xff]
    %v1820 = vld [vmem:[%s1795 + $0xc0] sm:$0xff]
    %v1821 = vld [vmem:[%s1795 + $0xc8] sm:$0xff]
    %v1822 = vld [vmem:[%s1795 + $0xd0] sm:$0xff]
    %v1823 = vld [vmem:[%s1795 + $0xd8] sm:$0xff]
    %v1824 = vld [vmem:[%s1795 + $0xe0] sm:$0xff]
    %v1825 = vld [vmem:[%s1795 + $0xe8] sm:$0xff]
    %v1826 = vld [vmem:[%s1795 + $0xf0] sm:$0xff]
    %v1827 = vld [vmem:[%s1795 + $0xf8] sm:$0xff]
    %v1860 = vunpack.c.l.b16 %v1796
    %v1861 = vunpack.c.h.b16 %v1796
    %v1862 = vunpack.c.l.b16 %v1797
    %v1863 = vunpack.c.h.b16 %v1797
    %v1864 = vunpack.c.l.b16 %v1798
    %v1865 = vunpack.c.h.b16 %v1798
    %v1866 = vunpack.c.l.b16 %v1799
    %v1867 = vunpack.c.h.b16 %v1799
    %v1868 = vunpack.c.l.b16 %v1800
    %v1869 = vunpack.c.h.b16 %v1800
    %v1870 = vunpack.c.l.b16 %v1801
    %v1871 = vunpack.c.h.b16 %v1801
    %v1872 = vunpack.c.l.b16 %v1802
    %v1873 = vunpack.c.h.b16 %v1802
    %v1874 = vunpack.c.l.b16 %v1803
    %v1875 = vunpack.c.h.b16 %v1803
    %v1876 = vunpack.c.l.b16 %v1804
    %v1877 = vunpack.c.h.b16 %v1804
    %v1878 = vunpack.c.l.b16 %v1805
    %v1879 = vunpack.c.h.b16 %v1805
    %v1880 = vunpack.c.l.b16 %v1806
    %v1881 = vunpack.c.h.b16 %v1806
    %v1882 = vunpack.c.l.b16 %v1807
    %v1883 = vunpack.c.h.b16 %v1807
    %v1884 = vunpack.c.l.b16 %v1808
    %v1885 = vunpack.c.h.b16 %v1808
    %v1886 = vunpack.c.l.b16 %v1809
    %v1887 = vunpack.c.h.b16 %v1809
    %v1888 = vunpack.c.l.b16 %v1810
    %v1889 = vunpack.c.h.b16 %v1810
    %v1890 = vunpack.c.l.b16 %v1811
    %v1891 = vunpack.c.h.b16 %v1811
    %v1892 = vunpack.c.l.b16 %v1812
    %v1893 = vunpack.c.h.b16 %v1812
    %v1894 = vunpack.c.l.b16 %v1813
    %v1895 = vunpack.c.h.b16 %v1813
    %v1896 = vunpack.c.l.b16 %v1814
    %v1897 = vunpack.c.h.b16 %v1814
    %v1898 = vunpack.c.l.b16 %v1815
    %v1899 = vunpack.c.h.b16 %v1815
    %v1900 = vunpack.c.l.b16 %v1816
    %v1901 = vunpack.c.h.b16 %v1816
    %v1902 = vunpack.c.l.b16 %v1817
    %v1903 = vunpack.c.h.b16 %v1817
    %v1904 = vunpack.c.l.b16 %v1818
    %v1905 = vunpack.c.h.b16 %v1818
    %v1906 = vunpack.c.l.b16 %v1819
    %v1907 = vunpack.c.h.b16 %v1819
    %v1908 = vunpack.c.l.b16 %v1820
    %v1909 = vunpack.c.h.b16 %v1820
    %v1910 = vunpack.c.l.b16 %v1821
    %v1911 = vunpack.c.h.b16 %v1821
    %v1912 = vunpack.c.l.b16 %v1822
    %v1913 = vunpack.c.h.b16 %v1822
    %v1914 = vunpack.c.l.b16 %v1823
    %v1915 = vunpack.c.h.b16 %v1823
    %v1916 = vunpack.c.l.b16 %v1824
    %v1917 = vunpack.c.h.b16 %v1824
    %v1918 = vunpack.c.l.b16 %v1825
    %v1919 = vunpack.c.h.b16 %v1825
    %v1920 = vunpack.c.l.b16 %v1826
    %v1921 = vunpack.c.h.b16 %v1826
    %v1922 = vunpack.c.l.b16 %v1827
    %v1923 = vunpack.c.h.b16 %v1827
    %v1924 = vpack.c.b16 %v1862, %v1860
    %v1925 = vpack.c.b16 %v1863, %v1861
    %v1926 = vpack.c.b16 %v1866, %v1864
    %v1927 = vpack.c.b16 %v1867, %v1865
    %v1928 = vpack.c.b16 %v1870, %v1868
    %v1929 = vpack.c.b16 %v1871, %v1869
    %v1930 = vpack.c.b16 %v1874, %v1872
    %v1931 = vpack.c.b16 %v1875, %v1873
    %v1932 = vpack.c.b16 %v1878, %v1876
    %v1933 = vpack.c.b16 %v1879, %v1877
    %v1934 = vpack.c.b16 %v1882, %v1880
    %v1935 = vpack.c.b16 %v1883, %v1881
    %v1936 = vpack.c.b16 %v1886, %v1884
    %v1937 = vpack.c.b16 %v1887, %v1885
    %v1938 = vpack.c.b16 %v1890, %v1888
    %v1939 = vpack.c.b16 %v1891, %v1889
    %v1940 = vpack.c.b16 %v1894, %v1892
    %v1941 = vpack.c.b16 %v1895, %v1893
    %v1942 = vpack.c.b16 %v1898, %v1896
    %v1943 = vpack.c.b16 %v1899, %v1897
    %v1944 = vpack.c.b16 %v1902, %v1900
    %v1945 = vpack.c.b16 %v1903, %v1901
    %v1946 = vpack.c.b16 %v1906, %v1904
    %v1947 = vpack.c.b16 %v1907, %v1905
    %v1948 = vpack.c.b16 %v1910, %v1908
    %v1949 = vpack.c.b16 %v1911, %v1909
    %v1950 = vpack.c.b16 %v1914, %v1912
    %v1951 = vpack.c.b16 %v1915, %v1913
    %v1952 = vpack.c.b16 %v1918, %v1916
    %v1953 = vpack.c.b16 %v1919, %v1917
    %v1954 = vpack.c.b16 %v1922, %v1920
    %v1955 = vpack.c.b16 %v1923, %v1921
    %1988 = vmatprep.subr.bf16.mxu0 %v1925
    %1989 = vmatpush1.bf16.msra.mxu0 %v1924
    %1990 = vmatprep.subr.bf16.mxu0 %v1927
    %1991 = vmatpush1.bf16.msra.mxu0 %v1926
    %1992 = vmatprep.subr.bf16.mxu0 %v1929
    %1993 = vmatpush1.bf16.msra.mxu0 %v1928
    %1994 = vmatprep.subr.bf16.mxu0 %v1931
    %1995 = vmatpush1.bf16.msra.mxu0 %v1930
    %1996 = vmatprep.subr.bf16.mxu0 %v1933
    %1997 = vmatpush1.bf16.msra.mxu0 %v1932
    %1998 = vmatprep.subr.bf16.mxu0 %v1935
    %1999 = vmatpush1.bf16.msra.mxu0 %v1934
    %2000 = vmatprep.subr.bf16.mxu0 %v1937
    %2001 = vmatpush1.bf16.msra.mxu0 %v1936
    %2002 = vmatprep.subr.bf16.mxu0 %v1939
    %2003 = vmatpush1.bf16.msra.mxu0 %v1938
    %2004 = vmatprep.subr.bf16.mxu0 %v1941
    %2005 = vmatpush1.bf16.msra.mxu0 %v1940
    %2006 = vmatprep.subr.bf16.mxu0 %v1943
    %2007 = vmatpush1.bf16.msra.mxu0 %v1942
    %2008 = vmatprep.subr.bf16.mxu0 %v1945
    %2009 = vmatpush1.bf16.msra.mxu0 %v1944
    %2010 = vmatprep.subr.bf16.mxu0 %v1947
    %2011 = vmatpush1.bf16.msra.mxu0 %v1946
    %2012 = vmatprep.subr.bf16.mxu0 %v1949
    %2013 = vmatpush1.bf16.msra.mxu0 %v1948
    %2014 = vmatprep.subr.bf16.mxu0 %v1951
    %2015 = vmatpush1.bf16.msra.mxu0 %v1950
    %2016 = vmatprep.subr.bf16.mxu0 %v1953
    %2017 = vmatpush1.bf16.msra.mxu0 %v1952
    %2018 = vmatprep.subr.bf16.mxu0 %v1955
    %2019 = vmatpush1.bf16.msra.mxu0 %v1954
    %2020 = vmatprep.mubr.bf16.mxu0 %v1794
    %2021 = vmatmul.mubr.bf16.gmra.mrb[0].mxu0 %v1793
    %v2022 = vpop.f32.mrb[0].mxu0
    %v2023 = vadd.f32 0.0, %v2022
    %v2024 = vpop.f32.mrb[0].mxu0
    %v2025 = vadd.f32 0.0, %v2024
    %v2026 = vpop.f32.mrb[0].mxu0
    %v2027 = vadd.f32 0.0, %v2026
    %v2028 = vpop.f32.mrb[0].mxu0
    %v2029 = vadd.f32 0.0, %v2028
    %2030 = vdwg.mxu0
    %v2031 = vadd.f32 %v1784, %v2023
    %v2032 = vadd.f32 %v1785, %v2025
    %v2033 = vadd.f32 %v1786, %v2027
    %v2034 = vadd.f32 %v1787, %v2029
    %s2035 = scalar_lea.vmem [#allocation2], 256
    %v2036 = vld [vmem:[%s2035] sm:$0xff]
    %v2037 = vld [vmem:[%s2035 + $0x8] sm:$0xff]
    %v2038 = vld [vmem:[%s2035 + $0x10] sm:$0xff]
    %v2039 = vld [vmem:[%s2035 + $0x18] sm:$0xff]
    %v2040 = vpack.c.bf16 %v2038, %v2036
    %v2041 = vpack.c.bf16 %v2039, %v2037
    %s2042 = scalar_lea.vmem [#allocation5], 2048
    %v2043 = vld [vmem:[%s2042] sm:$0xff]
    %v2044 = vld [vmem:[%s2042 + $0x8] sm:$0xff]
    %v2045 = vld [vmem:[%s2042 + $0x10] sm:$0xff]
    %v2046 = vld [vmem:[%s2042 + $0x18] sm:$0xff]
    %v2047 = vld [vmem:[%s2042 + $0x20] sm:$0xff]
    %v2048 = vld [vmem:[%s2042 + $0x28] sm:$0xff]
    %v2049 = vld [vmem:[%s2042 + $0x30] sm:$0xff]
    %v2050 = vld [vmem:[%s2042 + $0x38] sm:$0xff]
    %v2051 = vld [vmem:[%s2042 + $0x40] sm:$0xff]
    %v2052 = vld [vmem:[%s2042 + $0x48] sm:$0xff]
    %v2053 = vld [vmem:[%s2042 + $0x50] sm:$0xff]
    %v2054 = vld [vmem:[%s2042 + $0x58] sm:$0xff]
    %v2055 = vld [vmem:[%s2042 + $0x60] sm:$0xff]
    %v2056 = vld [vmem:[%s2042 + $0x68] sm:$0xff]
    %v2057 = vld [vmem:[%s2042 + $0x70] sm:$0xff]
    %v2058 = vld [vmem:[%s2042 + $0x78] sm:$0xff]
    %v2059 = vld [vmem:[%s2042 + $0x80] sm:$0xff]
    %v2060 = vld [vmem:[%s2042 + $0x88] sm:$0xff]
    %v2061 = vld [vmem:[%s2042 + $0x90] sm:$0xff]
    %v2062 = vld [vmem:[%s2042 + $0x98] sm:$0xff]
    %v2063 = vld [vmem:[%s2042 + $0xa0] sm:$0xff]
    %v2064 = vld [vmem:[%s2042 + $0xa8] sm:$0xff]
    %v2065 = vld [vmem:[%s2042 + $0xb0] sm:$0xff]
    %v2066 = vld [vmem:[%s2042 + $0xb8] sm:$0xff]
    %v2067 = vld [vmem:[%s2042 + $0xc0] sm:$0xff]
    %v2068 = vld [vmem:[%s2042 + $0xc8] sm:$0xff]
    %v2069 = vld [vmem:[%s2042 + $0xd0] sm:$0xff]
    %v2070 = vld [vmem:[%s2042 + $0xd8] sm:$0xff]
    %v2071 = vld [vmem:[%s2042 + $0xe0] sm:$0xff]
    %v2072 = vld [vmem:[%s2042 + $0xe8] sm:$0xff]
    %v2073 = vld [vmem:[%s2042 + $0xf0] sm:$0xff]
    %v2074 = vld [vmem:[%s2042 + $0xf8] sm:$0xff]
    %v2107 = vunpack.c.l.b16 %v2043
    %v2108 = vunpack.c.h.b16 %v2043
    %v2109 = vunpack.c.l.b16 %v2044
    %v2110 = vunpack.c.h.b16 %v2044
    %v2111 = vunpack.c.l.b16 %v2045
    %v2112 = vunpack.c.h.b16 %v2045
    %v2113 = vunpack.c.l.b16 %v2046
    %v2114 = vunpack.c.h.b16 %v2046
    %v2115 = vunpack.c.l.b16 %v2047
    %v2116 = vunpack.c.h.b16 %v2047
    %v2117 = vunpack.c.l.b16 %v2048
    %v2118 = vunpack.c.h.b16 %v2048
    %v2119 = vunpack.c.l.b16 %v2049
    %v2120 = vunpack.c.h.b16 %v2049
    %v2121 = vunpack.c.l.b16 %v2050
    %v2122 = vunpack.c.h.b16 %v2050
    %v2123 = vunpack.c.l.b16 %v2051
    %v2124 = vunpack.c.h.b16 %v2051
    %v2125 = vunpack.c.l.b16 %v2052
    %v2126 = vunpack.c.h.b16 %v2052
    %v2127 = vunpack.c.l.b16 %v2053
    %v2128 = vunpack.c.h.b16 %v2053
    %v2129 = vunpack.c.l.b16 %v2054
    %v2130 = vunpack.c.h.b16 %v2054
    %v2131 = vunpack.c.l.b16 %v2055
    %v2132 = vunpack.c.h.b16 %v2055
    %v2133 = vunpack.c.l.b16 %v2056
    %v2134 = vunpack.c.h.b16 %v2056
    %v2135 = vunpack.c.l.b16 %v2057
    %v2136 = vunpack.c.h.b16 %v2057
    %v2137 = vunpack.c.l.b16 %v2058
    %v2138 = vunpack.c.h.b16 %v2058
    %v2139 = vunpack.c.l.b16 %v2059
    %v2140 = vunpack.c.h.b16 %v2059
    %v2141 = vunpack.c.l.b16 %v2060
    %v2142 = vunpack.c.h.b16 %v2060
    %v2143 = vunpack.c.l.b16 %v2061
    %v2144 = vunpack.c.h.b16 %v2061
    %v2145 = vunpack.c.l.b16 %v2062
    %v2146 = vunpack.c.h.b16 %v2062
    %v2147 = vunpack.c.l.b16 %v2063
    %v2148 = vunpack.c.h.b16 %v2063
    %v2149 = vunpack.c.l.b16 %v2064
    %v2150 = vunpack.c.h.b16 %v2064
    %v2151 = vunpack.c.l.b16 %v2065
    %v2152 = vunpack.c.h.b16 %v2065
    %v2153 = vunpack.c.l.b16 %v2066
    %v2154 = vunpack.c.h.b16 %v2066
    %v2155 = vunpack.c.l.b16 %v2067
    %v2156 = vunpack.c.h.b16 %v2067
    %v2157 = vunpack.c.l.b16 %v2068
    %v2158 = vunpack.c.h.b16 %v2068
    %v2159 = vunpack.c.l.b16 %v2069
    %v2160 = vunpack.c.h.b16 %v2069
    %v2161 = vunpack.c.l.b16 %v2070
    %v2162 = vunpack.c.h.b16 %v2070
    %v2163 = vunpack.c.l.b16 %v2071
    %v2164 = vunpack.c.h.b16 %v2071
    %v2165 = vunpack.c.l.b16 %v2072
    %v2166 = vunpack.c.h.b16 %v2072
    %v2167 = vunpack.c.l.b16 %v2073
    %v2168 = vunpack.c.h.b16 %v2073
    %v2169 = vunpack.c.l.b16 %v2074
    %v2170 = vunpack.c.h.b16 %v2074
    %v2171 = vpack.c.b16 %v2109, %v2107
    %v2172 = vpack.c.b16 %v2110, %v2108
    %v2173 = vpack.c.b16 %v2113, %v2111
    %v2174 = vpack.c.b16 %v2114, %v2112
    %v2175 = vpack.c.b16 %v2117, %v2115
    %v2176 = vpack.c.b16 %v2118, %v2116
    %v2177 = vpack.c.b16 %v2121, %v2119
    %v2178 = vpack.c.b16 %v2122, %v2120
    %v2179 = vpack.c.b16 %v2125, %v2123
    %v2180 = vpack.c.b16 %v2126, %v2124
    %v2181 = vpack.c.b16 %v2129, %v2127
    %v2182 = vpack.c.b16 %v2130, %v2128
    %v2183 = vpack.c.b16 %v2133, %v2131
    %v2184 = vpack.c.b16 %v2134, %v2132
    %v2185 = vpack.c.b16 %v2137, %v2135
    %v2186 = vpack.c.b16 %v2138, %v2136
    %v2187 = vpack.c.b16 %v2141, %v2139
    %v2188 = vpack.c.b16 %v2142, %v2140
    %v2189 = vpack.c.b16 %v2145, %v2143
    %v2190 = vpack.c.b16 %v2146, %v2144
    %v2191 = vpack.c.b16 %v2149, %v2147
    %v2192 = vpack.c.b16 %v2150, %v2148
    %v2193 = vpack.c.b16 %v2153, %v2151
    %v2194 = vpack.c.b16 %v2154, %v2152
    %v2195 = vpack.c.b16 %v2157, %v2155
    %v2196 = vpack.c.b16 %v2158, %v2156
    %v2197 = vpack.c.b16 %v2161, %v2159
    %v2198 = vpack.c.b16 %v2162, %v2160
    %v2199 = vpack.c.b16 %v2165, %v2163
    %v2200 = vpack.c.b16 %v2166, %v2164
    %v2201 = vpack.c.b16 %v2169, %v2167
    %v2202 = vpack.c.b16 %v2170, %v2168
    %2235 = vmatprep.subr.bf16.mxu0 %v2172
    %2236 = vmatpush1.bf16.msra.mxu0 %v2171
    %2237 = vmatprep.subr.bf16.mxu0 %v2174
    %2238 = vmatpush1.bf16.msra.mxu0 %v2173
    %2239 = vmatprep.subr.bf16.mxu0 %v2176
    %2240 = vmatpush1.bf16.msra.mxu0 %v2175
    %2241 = vmatprep.subr.bf16.mxu0 %v2178
    %2242 = vmatpush1.bf16.msra.mxu0 %v2177
    %2243 = vmatprep.subr.bf16.mxu0 %v2180
    %2244 = vmatpush1.bf16.msra.mxu0 %v2179
    %2245 = vmatprep.subr.bf16.mxu0 %v2182
    %2246 = vmatpush1.bf16.msra.mxu0 %v2181
    %2247 = vmatprep.subr.bf16.mxu0 %v2184
    %2248 = vmatpush1.bf16.msra.mxu0 %v2183
    %2249 = vmatprep.subr.bf16.mxu0 %v2186
    %2250 = vmatpush1.bf16.msra.mxu0 %v2185
    %2251 = vmatprep.subr.bf16.mxu0 %v2188
    %2252 = vmatpush1.bf16.msra.mxu0 %v2187
    %2253 = vmatprep.subr.bf16.mxu0 %v2190
    %2254 = vmatpush1.bf16.msra.mxu0 %v2189
    %2255 = vmatprep.subr.bf16.mxu0 %v2192
    %2256 = vmatpush1.bf16.msra.mxu0 %v2191
    %2257 = vmatprep.subr.bf16.mxu0 %v2194
    %2258 = vmatpush1.bf16.msra.mxu0 %v2193
    %2259 = vmatprep.subr.bf16.mxu0 %v2196
    %2260 = vmatpush1.bf16.msra.mxu0 %v2195
    %2261 = vmatprep.subr.bf16.mxu0 %v2198
    %2262 = vmatpush1.bf16.msra.mxu0 %v2197
    %2263 = vmatprep.subr.bf16.mxu0 %v2200
    %2264 = vmatpush1.bf16.msra.mxu0 %v2199
    %2265 = vmatprep.subr.bf16.mxu0 %v2202
    %2266 = vmatpush1.bf16.msra.mxu0 %v2201
    %2267 = vmatprep.mubr.bf16.mxu0 %v2041
    %2268 = vmatmul.mubr.bf16.gmra.mrb[0].mxu0 %v2040
    %v2269 = vpop.f32.mrb[0].mxu0
    %v2270 = vadd.f32 0.0, %v2269
    %v2271 = vpop.f32.mrb[0].mxu0
    %v2272 = vadd.f32 0.0, %v2271
    %v2273 = vpop.f32.mrb[0].mxu0
    %v2274 = vadd.f32 0.0, %v2273
    %v2275 = vpop.f32.mrb[0].mxu0
    %v2276 = vadd.f32 0.0, %v2275
    %2277 = vdwg.mxu0
    %v2278 = vadd.f32 %v2031, %v2270
    %v2279 = vadd.f32 %v2032, %v2272
    %v2280 = vadd.f32 %v2033, %v2274
    %v2281 = vadd.f32 %v2034, %v2276
    %s2282 = scalar_lea.vmem [#allocation2], 288
    %v2283 = vld [vmem:[%s2282] sm:$0xff]
    %v2284 = vld [vmem:[%s2282 + $0x8] sm:$0xff]
    %v2285 = vld [vmem:[%s2282 + $0x10] sm:$0xff]
    %v2286 = vld [vmem:[%s2282 + $0x18] sm:$0xff]
    %v2287 = vpack.c.bf16 %v2285, %v2283
    %v2288 = vpack.c.bf16 %v2286, %v2284
    %s2289 = scalar_lea.vmem [#allocation5], 2304
    %v2290 = vld [vmem:[%s2289] sm:$0xff]
    %v2291 = vld [vmem:[%s2289 + $0x8] sm:$0xff]
    %v2292 = vld [vmem:[%s2289 + $0x10] sm:$0xff]
    %v2293 = vld [vmem:[%s2289 + $0x18] sm:$0xff]
    %v2294 = vld [vmem:[%s2289 + $0x20] sm:$0xff]
    %v2295 = vld [vmem:[%s2289 + $0x28] sm:$0xff]
    %v2296 = vld [vmem:[%s2289 + $0x30] sm:$0xff]
    %v2297 = vld [vmem:[%s2289 + $0x38] sm:$0xff]
    %v2298 = vld [vmem:[%s2289 + $0x40] sm:$0xff]
    %v2299 = vld [vmem:[%s2289 + $0x48] sm:$0xff]
    %v2300 = vld [vmem:[%s2289 + $0x50] sm:$0xff]
    %v2301 = vld [vmem:[%s2289 + $0x58] sm:$0xff]
    %v2302 = vld [vmem:[%s2289 + $0x60] sm:$0xff]
    %v2303 = vld [vmem:[%s2289 + $0x68] sm:$0xff]
    %v2304 = vld [vmem:[%s2289 + $0x70] sm:$0xff]
    %v2305 = vld [vmem:[%s2289 + $0x78] sm:$0xff]
    %v2306 = vld [vmem:[%s2289 + $0x80] sm:$0xff]
    %v2307 = vld [vmem:[%s2289 + $0x88] sm:$0xff]
    %v2308 = vld [vmem:[%s2289 + $0x90] sm:$0xff]
    %v2309 = vld [vmem:[%s2289 + $0x98] sm:$0xff]
    %v2310 = vld [vmem:[%s2289 + $0xa0] sm:$0xff]
    %v2311 = vld [vmem:[%s2289 + $0xa8] sm:$0xff]
    %v2312 = vld [vmem:[%s2289 + $0xb0] sm:$0xff]
    %v2313 = vld [vmem:[%s2289 + $0xb8] sm:$0xff]
    %v2314 = vld [vmem:[%s2289 + $0xc0] sm:$0xff]
    %v2315 = vld [vmem:[%s2289 + $0xc8] sm:$0xff]
    %v2316 = vld [vmem:[%s2289 + $0xd0] sm:$0xff]
    %v2317 = vld [vmem:[%s2289 + $0xd8] sm:$0xff]
    %v2318 = vld [vmem:[%s2289 + $0xe0] sm:$0xff]
    %v2319 = vld [vmem:[%s2289 + $0xe8] sm:$0xff]
    %v2320 = vld [vmem:[%s2289 + $0xf0] sm:$0xff]
    %v2321 = vld [vmem:[%s2289 + $0xf8] sm:$0xff]
    %v2354 = vunpack.c.l.b16 %v2290
    %v2355 = vunpack.c.h.b16 %v2290
    %v2356 = vunpack.c.l.b16 %v2291
    %v2357 = vunpack.c.h.b16 %v2291
    %v2358 = vunpack.c.l.b16 %v2292
    %v2359 = vunpack.c.h.b16 %v2292
    %v2360 = vunpack.c.l.b16 %v2293
    %v2361 = vunpack.c.h.b16 %v2293
    %v2362 = vunpack.c.l.b16 %v2294
    %v2363 = vunpack.c.h.b16 %v2294
    %v2364 = vunpack.c.l.b16 %v2295
    %v2365 = vunpack.c.h.b16 %v2295
    %v2366 = vunpack.c.l.b16 %v2296
    %v2367 = vunpack.c.h.b16 %v2296
    %v2368 = vunpack.c.l.b16 %v2297
    %v2369 = vunpack.c.h.b16 %v2297
    %v2370 = vunpack.c.l.b16 %v2298
    %v2371 = vunpack.c.h.b16 %v2298
    %v2372 = vunpack.c.l.b16 %v2299
    %v2373 = vunpack.c.h.b16 %v2299
    %v2374 = vunpack.c.l.b16 %v2300
    %v2375 = vunpack.c.h.b16 %v2300
    %v2376 = vunpack.c.l.b16 %v2301
    %v2377 = vunpack.c.h.b16 %v2301
    %v2378 = vunpack.c.l.b16 %v2302
    %v2379 = vunpack.c.h.b16 %v2302
    %v2380 = vunpack.c.l.b16 %v2303
    %v2381 = vunpack.c.h.b16 %v2303
    %v2382 = vunpack.c.l.b16 %v2304
    %v2383 = vunpack.c.h.b16 %v2304
    %v2384 = vunpack.c.l.b16 %v2305
    %v2385 = vunpack.c.h.b16 %v2305
    %v2386 = vunpack.c.l.b16 %v2306
    %v2387 = vunpack.c.h.b16 %v2306
    %v2388 = vunpack.c.l.b16 %v2307
    %v2389 = vunpack.c.h.b16 %v2307
    %v2390 = vunpack.c.l.b16 %v2308
    %v2391 = vunpack.c.h.b16 %v2308
    %v2392 = vunpack.c.l.b16 %v2309
    %v2393 = vunpack.c.h.b16 %v2309
    %v2394 = vunpack.c.l.b16 %v2310
    %v2395 = vunpack.c.h.b16 %v2310
    %v2396 = vunpack.c.l.b16 %v2311
    %v2397 = vunpack.c.h.b16 %v2311
    %v2398 = vunpack.c.l.b16 %v2312
    %v2399 = vunpack.c.h.b16 %v2312
    %v2400 = vunpack.c.l.b16 %v2313
    %v2401 = vunpack.c.h.b16 %v2313
    %v2402 = vunpack.c.l.b16 %v2314
    %v2403 = vunpack.c.h.b16 %v2314
    %v2404 = vunpack.c.l.b16 %v2315
    %v2405 = vunpack.c.h.b16 %v2315
    %v2406 = vunpack.c.l.b16 %v2316
    %v2407 = vunpack.c.h.b16 %v2316
    %v2408 = vunpack.c.l.b16 %v2317
    %v2409 = vunpack.c.h.b16 %v2317
    %v2410 = vunpack.c.l.b16 %v2318
    %v2411 = vunpack.c.h.b16 %v2318
    %v2412 = vunpack.c.l.b16 %v2319
    %v2413 = vunpack.c.h.b16 %v2319
    %v2414 = vunpack.c.l.b16 %v2320
    %v2415 = vunpack.c.h.b16 %v2320
    %v2416 = vunpack.c.l.b16 %v2321
    %v2417 = vunpack.c.h.b16 %v2321
    %v2418 = vpack.c.b16 %v2356, %v2354
    %v2419 = vpack.c.b16 %v2357, %v2355
    %v2420 = vpack.c.b16 %v2360, %v2358
    %v2421 = vpack.c.b16 %v2361, %v2359
    %v2422 = vpack.c.b16 %v2364, %v2362
    %v2423 = vpack.c.b16 %v2365, %v2363
    %v2424 = vpack.c.b16 %v2368, %v2366
    %v2425 = vpack.c.b16 %v2369, %v2367
    %v2426 = vpack.c.b16 %v2372, %v2370
    %v2427 = vpack.c.b16 %v2373, %v2371
    %v2428 = vpack.c.b16 %v2376, %v2374
    %v2429 = vpack.c.b16 %v2377, %v2375
    %v2430 = vpack.c.b16 %v2380, %v2378
    %v2431 = vpack.c.b16 %v2381, %v2379
    %v2432 = vpack.c.b16 %v2384, %v2382
    %v2433 = vpack.c.b16 %v2385, %v2383
    %v2434 = vpack.c.b16 %v2388, %v2386
    %v2435 = vpack.c.b16 %v2389, %v2387
    %v2436 = vpack.c.b16 %v2392, %v2390
    %v2437 = vpack.c.b16 %v2393, %v2391
    %v2438 = vpack.c.b16 %v2396, %v2394
    %v2439 = vpack.c.b16 %v2397, %v2395
    %v2440 = vpack.c.b16 %v2400, %v2398
    %v2441 = vpack.c.b16 %v2401, %v2399
    %v2442 = vpack.c.b16 %v2404, %v2402
    %v2443 = vpack.c.b16 %v2405, %v2403
    %v2444 = vpack.c.b16 %v2408, %v2406
    %v2445 = vpack.c.b16 %v2409, %v2407
    %v2446 = vpack.c.b16 %v2412, %v2410
    %v2447 = vpack.c.b16 %v2413, %v2411
    %v2448 = vpack.c.b16 %v2416, %v2414
    %v2449 = vpack.c.b16 %v2417, %v2415
    %2482 = vmatprep.subr.bf16.mxu0 %v2419
    %2483 = vmatpush1.bf16.msra.mxu0 %v2418
    %2484 = vmatprep.subr.bf16.mxu0 %v2421
    %2485 = vmatpush1.bf16.msra.mxu0 %v2420
    %2486 = vmatprep.subr.bf16.mxu0 %v2423
    %2487 = vmatpush1.bf16.msra.mxu0 %v2422
    %2488 = vmatprep.subr.bf16.mxu0 %v2425
    %2489 = vmatpush1.bf16.msra.mxu0 %v2424
    %2490 = vmatprep.subr.bf16.mxu0 %v2427
    %2491 = vmatpush1.bf16.msra.mxu0 %v2426
    %2492 = vmatprep.subr.bf16.mxu0 %v2429
    %2493 = vmatpush1.bf16.msra.mxu0 %v2428
    %2494 = vmatprep.subr.bf16.mxu0 %v2431
    %2495 = vmatpush1.bf16.msra.mxu0 %v2430
    %2496 = vmatprep.subr.bf16.mxu0 %v2433
    %2497 = vmatpush1.bf16.msra.mxu0 %v2432
    %2498 = vmatprep.subr.bf16.mxu0 %v2435
    %2499 = vmatpush1.bf16.msra.mxu0 %v2434
    %2500 = vmatprep.subr.bf16.mxu0 %v2437
    %2501 = vmatpush1.bf16.msra.mxu0 %v2436
    %2502 = vmatprep.subr.bf16.mxu0 %v2439
    %2503 = vmatpush1.bf16.msra.mxu0 %v2438
    %2504 = vmatprep.subr.bf16.mxu0 %v2441
    %2505 = vmatpush1.bf16.msra.mxu0 %v2440
    %2506 = vmatprep.subr.bf16.mxu0 %v2443
    %2507 = vmatpush1.bf16.msra.mxu0 %v2442
    %2508 = vmatprep.subr.bf16.mxu0 %v2445
    %2509 = vmatpush1.bf16.msra.mxu0 %v2444
    %2510 = vmatprep.subr.bf16.mxu0 %v2447
    %2511 = vmatpush1.bf16.msra.mxu0 %v2446
    %2512 = vmatprep.subr.bf16.mxu0 %v2449
    %2513 = vmatpush1.bf16.msra.mxu0 %v2448
    %2514 = vmatprep.mubr.bf16.mxu0 %v2288
    %2515 = vmatmul.mubr.bf16.gmra.mrb[0].mxu0 %v2287
    %v2516 = vpop.f32.mrb[0].mxu0
    %v2517 = vadd.f32 0.0, %v2516
    %v2518 = vpop.f32.mrb[0].mxu0
    %v2519 = vadd.f32 0.0, %v2518
    %v2520 = vpop.f32.mrb[0].mxu0
    %v2521 = vadd.f32 0.0, %v2520
    %v2522 = vpop.f32.mrb[0].mxu0
    %v2523 = vadd.f32 0.0, %v2522
    %2524 = vdwg.mxu0
    %v2525 = vadd.f32 %v2278, %v2517
    %v2526 = vadd.f32 %v2279, %v2519
    %v2527 = vadd.f32 %v2280, %v2521
    %v2528 = vadd.f32 %v2281, %v2523
    %v2529 = vadd.f32 %v2525, %v2527
    %v2530 = vrot.slane %v2529, 4
    %v2531 = vadd.f32 %v2529, %v2530
    %v2532 = vrot.slane %v2531, 2
    %v2533 = vadd.f32 %v2531, %v2532
    %v2534 = vrot.slane %v2533, 1
    %v2535 = vadd.f32 %v2533, %v2534
    %v2536 = vadd.f32 %v2526, %v2528
    %v2537 = vrot.slane %v2536, 4
    %v2538 = vadd.f32 %v2536, %v2537
    %v2539 = vrot.slane %v2538, 2
    %v2540 = vadd.f32 %v2538, %v2539
    %v2541 = vrot.slane %v2540, 1
    %v2542 = vadd.f32 %v2540, %v2541
    %v2543 = vmul.f32 %v2525, %v2525
    %v2544 = vmul.f32 %v2526, %v2526
    %v2545 = vmul.f32 %v2527, %v2527
    %v2546 = vmul.f32 %v2528, %v2528
    %v2547 = vadd.f32 %v2543, %v2545
    %v2548 = vrot.slane %v2547, 4
    %v2549 = vadd.f32 %v2547, %v2548
    %v2550 = vrot.slane %v2549, 2
    %v2551 = vadd.f32 %v2549, %v2550
    %v2552 = vrot.slane %v2551, 1
    %v2553 = vadd.f32 %v2551, %v2552
    %v2554 = vadd.f32 %v2544, %v2546
    %v2555 = vrot.slane %v2554, 4
    %v2556 = vadd.f32 %v2554, %v2555
    %v2557 = vrot.slane %v2556, 2
    %v2558 = vadd.f32 %v2556, %v2557
    %v2559 = vrot.slane %v2558, 1
    %v2560 = vadd.f32 %v2558, %v2559
    %v2561 = vmul.f32 %v2535, 0.083333336
    %v2562 = vmul.f32 %v2542, 0.083333336
    %v2563 = vmul.f32 %v2553, 0.083333336
    %v2564 = vmul.f32 %v2560, 0.083333336
    %v2565 = vmul.f32 %v2561, %v2561
    %v2566 = vmul.f32 %v2562, %v2562
    %v2567 = vsub.f32 %v2563, %v2565
    %v2568 = vsub.f32 %v2564, %v2566
    %v2569 = vld [vmem:[#allocation7] sm:$0x3]
    %v2570 = vadd.f32 %v2567, 1e-05
    %v2571 = vadd.f32 %v2568, 1e-05
    %v2572 = vrsqrt.pop %v2570
    %v2573 = vrsqrt.pop %v2571
    %v2576 = vcombine.low %v2572, %v2573
    %v2578 = vunpack.c.l.s4 1966171168
    %v2579 = vunpack.c.0.s8 %v2578
    %v2580 = vlaneseq
    %v2581 = vshrl.u32 %v2580, 7
    %v2582 = vsub.s32 %v2579, %v2581
    %v2583 = vrot.slane %v2576, %v2582
    %v2585 = vunpack.c.l.s4 1966171168
    %v2586 = vunpack.c.0.s8 %v2585
    %v2587 = vlaneseq
    %v2588 = vshrl.u32 %v2587, 7
    %v2589 = vsub.s32 %v2586, %v2588
    %v2590 = vrot.slane %v2583, %v2589
    %v2592 = vmul.f32 %v2569, %v2590
    %v2593 = vld [vmem:[#allocation8] sm:$0x3]
    %v2595 = vlaneseq
    %v2596 = vshrl.u32 %v2595, 7
    %v2597 = vsub.s32 0, %v2596
    %v2598 = vrot.slane %v2592, %v2597
    %v2599 = vlaneseq
    %v2600 = vshrl.u32 %v2599, 7
    %v2601 = vsub.s32 1, %v2600
    %v2602 = vrot.slane %v2592, %v2601
    %v2605 = vmul.f32 %v2561, %v2598
    %v2606 = vmul.f32 %v2562, %v2602
    %v2609 = vcombine.low %v2605, %v2606
    %v2611 = vunpack.c.l.s4 1966171168
    %v2612 = vunpack.c.0.s8 %v2611
    %v2613 = vlaneseq
    %v2614 = vshrl.u32 %v2613, 7
    %v2615 = vsub.s32 %v2612, %v2614
    %v2616 = vrot.slane %v2609, %v2615
    %v2618 = vunpack.c.l.s4 1966171168
    %v2619 = vunpack.c.0.s8 %v2618
    %v2620 = vlaneseq
    %v2621 = vshrl.u32 %v2620, 7
    %v2622 = vsub.s32 %v2619, %v2621
    %v2623 = vrot.slane %v2616, %v2622
    %v2625 = vsub.f32 %v2593, %v2623
    %v2626 = vmul.f32 %v2525, %v2598
    %v2627 = vmul.f32 %v2526, %v2602
    %v2628 = vmul.f32 %v2527, %v2598
    %v2629 = vmul.f32 %v2528, %v2602
    %v2631 = vlaneseq
    %v2632 = vshrl.u32 %v2631, 7
    %v2633 = vsub.s32 0, %v2632
    %v2634 = vrot.slane %v2625, %v2633
    %v2635 = vlaneseq
    %v2636 = vshrl.u32 %v2635, 7
    %v2637 = vsub.s32 1, %v2636
    %v2638 = vrot.slane %v2625, %v2637
    %v2641 = vadd.f32 %v2626, %v2634
    %v2642 = vadd.f32 %v2627, %v2638
    %v2643 = vadd.f32 %v2628, %v2634
    %v2644 = vadd.f32 %v2629, %v2638
    %2645 = vst [vmem:[#allocation10] sm:$0xff] %v2641
    %2646 = vst [vmem:[#allocation10 + $0x8] sm:$0xff] %v2642
    %2647 = vst [vmem:[#allocation10 + $0x10] sm:$0xff] %v2643
    %2648 = vst [vmem:[#allocation10 + $0x18] sm:$0xff] %v2644
    // Predicated region
    $region34: #{tpu_custom_call.1} parent=1 // pred_check
      _
    $region35: #{tpu_custom_call.1} parent=1 // pred_check_branch
      %2650 = sbr.rel (0) target = $region37
    $region36: #{tpu_custom_call.1} parent=1 // pred_region
      %s2652 = ssub.s32 512, 512
      %2653 = vsyncadd [#allocation4], %s2652
      %s2654 = sshll.u32 [#allocation10], 4
      %s2655 = int_to_ptr.vmem [resolvable:$true] %s2654
      %2660 = dma.vmem_to_hbm [thread:$0]  %s2655, 512, %s4, [#allocation4], 256, 256, 16
    $region37: #{tpu_custom_call.1} parent=1 // pred_fallthru
      _
    // Predicated region
    $region38: #{tpu_custom_call.1} parent=1 // pred_check
      _
    $region39: #{tpu_custom_call.1} parent=1 // pred_check_branch
      %2662 = sbr.rel (0) target = $region41
    $region40: #{tpu_custom_call.1} parent=1 // pred_region
      %2663 = dma.done [#allocation4], 512
    $region41: #{tpu_custom_call.1} parent=1 // pred_fallthru
      _
    %2664 = vsyncpa [#allocation3], 1
    %2665 = vsyncpa [#allocation6], 1
    %2666 = vsyncpa [#allocation9], 1
    %2667 = vsyncpa [#allocation4], 1

</llo_original>
